<compile_context>
chip_gen: v6e
topology: v6e:2x2x1
jax: 0.10.0
libtpu: 0.0.40
codegen_flags: <defaults>
</compile_context>

<pallas_src>
import functools

import jax
import jax.numpy as jnp
import numpy as np
from jax import lax
from jax.experimental import pallas as pl
from jax.experimental.pallas import tpu as pltpu

SUBLANES = 8                    # f32 sublane count -> batch padding
LANES = 128                     # lane count        -> vocab / reward-width padding
MATMUL_DTYPE = jnp.bfloat16     # MXU-native dtype; accumulation stays f32


def _round_up(x, m):
    return ((x + m - 1) // m) * m


def hnn_kernel(B, S, Bp,                           # static, bound via functools.partial
               tok_ref,                            # (S*Bp, 1) int32, time-major, pad = -1
               emb_ref,                            # (Vp, H) bf16 embedding table (row-padded)
               w_ih_e_ref, w_hh_e_ref, b_e_ref,    # encoder RNN (H,H) bf16, (H,H) bf16, (1,H) f32
               w_ih_d_ref, w_hh_d_ref, b_d_ref,    # decoder RNN
               w_out_ref, b_out_ref,               # output Linear (H,O) bf16, (1,O) f32
               w_r_ref, b_r_ref,                   # reward Linear (O,Rp) bf16, (1,Rp) f32
               out_ref, rew_ref):                  # (Bp,O) f32, (Bp,Rp) f32
    Vp, H = emb_ref.shape

    # ---- 1) Project the embedding table once, folding the encoder input bias:
    #         P[v] = E[v] @ W_ih_e + b_e.  One (Vp,H)x(H,H) matmul, off the
    #         recurrent chain. ----
    proj = (jnp.dot(emb_ref[...], w_ih_e_ref[...],
                    preferred_element_type=jnp.float32)
            + b_e_ref[...]).astype(MATMUL_DTYPE)                        # (Vp, H)

    # ---- 2) One-hot MXU gather (no scalar loops, no masked sublane stores):
    #         onehot[r, v] = (tok[r] == v) with r = t*Bp + b (time-major), then
    #         pre = onehot @ P.  Padded rows (tok == -1) select nothing -> 0. ----
    col = lax.broadcasted_iota(jnp.int32, (S * Bp, Vp), 1)
    onehot = jnp.where(col == tok_ref[...], 1.0, 0.0).astype(MATMUL_DTYPE)
    pre = jnp.dot(onehot, proj, preferred_element_type=jnp.float32)     # (S*Bp, H) in vregs

    # ---- 3) Encoder recurrence: h_t = tanh(pre_t + h_{t-1} @ W_hh_e).
    #         One dependent matmul per step; everything stays in vregs.
    #         W_hh_e's live range is scoped to this loop only. ----
    # TODO(synk): on v5e/v6e, pltpu.matmul_push_rhs/matmul_acc_lhs could keep
    # W_hh_e in the MXU staging registers across all S unrolled steps.
    w_hh_e = w_hh_e_ref[...]
    h = jnp.zeros((Bp, H), jnp.float32)
    for t in range(S):                                  # S static -> fully unrolled
        pre_t = pre[t * Bp:(t + 1) * Bp, :]
        h = jnp.tanh(pre_t + jnp.dot(h.astype(MATMUL_DTYPE), w_hh_e,
                                     preferred_element_type=jnp.float32))

    # ---- 4) Decoder: PyTorch feeds hidden (1, B, H) batch_first, i.e. batch=1,
    #         seq_len=B.  Input projection hoisted out of the recurrence; hidden
    #         rows accumulated into a (Bp,H) vreg value (no VMEM round trip). ----
    pre_d = jnp.dot(h.astype(MATMUL_DTYPE), w_ih_d_ref[...],
                    preferred_element_type=jnp.float32) + b_d_ref[...]   # (Bp, H)
    w_hh_d = w_hh_d_ref[...]
    row_ids = lax.broadcasted_iota(jnp.int32, (Bp, H), 0)
    d_h = jnp.zeros((1, H), jnp.float32)
    dec = jnp.zeros((Bp, H), jnp.float32)
    for b in range(B):                                  # B static -> fully unrolled
        d_h = jnp.tanh(pre_d[b:b + 1, :] +
                       jnp.dot(d_h.astype(MATMUL_DTYPE), w_hh_d,
                               preferred_element_type=jnp.float32))
        dec = jnp.where(row_ids == b, d_h, dec)         # in-register row update

    # ---- 5) Output Linear + softmax(dim=-1), then reward Linear.
    #         NOTE: padded batch rows (b >= B) hold softmax(b_out) and its
    #         reward projection; the wrapper slices them off -- never use them. ----
    logits = jnp.dot(dec.astype(MATMUL_DTYPE), w_out_ref[...],
                     preferred_element_type=jnp.float32) + b_out_ref[...]   # (Bp, O)
    m = jnp.max(logits, axis=-1, keepdims=True)
    e = jnp.exp(logits - m)
    probs = e * pl.reciprocal(jnp.sum(e, axis=-1, keepdims=True), approx=True)

    out_ref[...] = probs
    rew_ref[...] = jnp.dot(probs.astype(MATMUL_DTYPE), w_r_ref[...],
                           preferred_element_type=jnp.float32) + b_r_ref[...]


def init_params(key, input_size, hidden_size, output_size, reward_size):
    # Deterministic synthetic init (PyTorch-style uniform(-1/sqrt(H), 1/sqrt(H))).
    # Weights stored as (in, out) so matmuls are x @ W.
    ks = jax.random.split(key, 13)
    s = 1.0 / float(np.sqrt(hidden_size))
    u = lambda k, shape: jax.random.uniform(k, shape, jnp.float32, -s, s)
    return dict(
        embedding=jax.random.normal(ks[0], (input_size, hidden_size), jnp.float32),
        w_ih_e=u(ks[1], (hidden_size, hidden_size)),
        w_hh_e=u(ks[2], (hidden_size, hidden_size)),
        b_ih_e=u(ks[3], (1, hidden_size)),
        b_hh_e=u(ks[4], (1, hidden_size)),
        w_ih_d=u(ks[5], (hidden_size, hidden_size)),
        w_hh_d=u(ks[6], (hidden_size, hidden_size)),
        b_ih_d=u(ks[7], (1, hidden_size)),
        b_hh_d=u(ks[8], (1, hidden_size)),
        w_out=u(ks[9], (hidden_size, output_size)),
        b_out=u(ks[10], (1, output_size)),
        # NOTE: the torch module declares Linear(hidden_size, reward_size) but
        # applies it to the softmaxed output (output_size features) -> O == H.
        w_r=u(ks[11], (output_size, reward_size)),
        b_r=u(ks[12], (1, reward_size)),
    )


def pack_params(p):
    """One-time host prep: fold RNN biases, lane-pad vocab & reward head, and
    cast matmul operands (weights/table) to the MXU-native dtype. Biases f32."""
    V, H = p["embedding"].shape
    Vp = _round_up(V, LANES)
    emb_pad = jnp.zeros((Vp, H), jnp.float32).at[:V, :].set(p["embedding"])
    O, R = p["w_r"].shape
    Rp = _round_up(R, LANES)
    w_r_pad = jnp.zeros((O, Rp), jnp.float32).at[:, :R].set(p["w_r"])
    b_r_pad = jnp.zeros((1, Rp), jnp.float32).at[:, :R].set(p["b_r"])
    c = lambda w: w.astype(MATMUL_DTYPE)
    return dict(
        embedding=c(emb_pad),
        w_ih_e=c(p["w_ih_e"]), w_hh_e=c(p["w_hh_e"]), b_e=p["b_ih_e"] + p["b_hh_e"],
        w_ih_d=c(p["w_ih_d"]), w_hh_d=c(p["w_hh_d"]), b_d=p["b_ih_d"] + p["b_hh_d"],
        w_out=c(p["w_out"]), b_out=p["b_out"],
        w_r_pad=c(w_r_pad), b_r_pad=b_r_pad,
    )


def hierarchical_forward(tokens, pp, reward_size):
    B, S = tokens.shape
    O = pp["w_out"].shape[1]
    Rp = pp["w_r_pad"].shape[1]
    Bp = _round_up(B, SUBLANES)                     # pad batch to full sublanes

    # Time-major, batch-padded token column; -1 pad never matches a vocab id,
    # so padded rows get an all-zero one-hot inside the kernel.
    tok_tm = jnp.pad(tokens.T.astype(jnp.int32), ((0, 0), (0, Bp - B)),
                     constant_values=-1).reshape(S * Bp, 1)

    vmem = pl.BlockSpec(memory_space=pltpu.MemorySpace.VMEM)
    # TODO(synk): for real (large-batch / many-sequence) workloads, add a leading
    # batch-block grid axis with dimension_semantics=("parallel",) so v7x's two
    # TensorCores split the work and the per-call dispatch cost is amortized.
    out, rew = pl.pallas_call(
        functools.partial(hnn_kernel, B, S, Bp),
        out_shape=(jax.ShapeDtypeStruct((Bp, O), jnp.float32),
                   jax.ShapeDtypeStruct((Bp, Rp), jnp.float32)),
        in_specs=[vmem] * 12,
        out_specs=(vmem, vmem),
    )(tok_tm,
      pp["embedding"],
      pp["w_ih_e"], pp["w_hh_e"], pp["b_e"],
      pp["w_ih_d"], pp["w_hh_d"], pp["b_d"],
      pp["w_out"], pp["b_out"], pp["w_r_pad"], pp["b_r_pad"])

    # Match PyTorch return shapes: (1, B, O), (1, B, R); slice off the padding.
    return out[None, :B, :], rew[None, :B, :reward_size]


def reference_forward(tokens, p):
    # Pure-JAX f32 reference of the exact same semantics (correctness check).
    emb = p["embedding"][tokens]                        # (B, S, H)
    B, S, H = emb.shape
    h = jnp.zeros((B, H), jnp.float32)
    for t in range(S):
        h = jnp.tanh(emb[:, t, :] @ p["w_ih_e"] + p["b_ih_e"]
                     + h @ p["w_hh_e"] + p["b_hh_e"])
    d = jnp.zeros((1, H), jnp.float32)
    rows = []
    for b in range(B):
        d = jnp.tanh(h[b:b + 1] @ p["w_ih_d"] + p["b_ih_d"]
                     + d @ p["w_hh_d"] + p["b_hh_d"])
        rows.append(d)
    dec = jnp.concatenate(rows, axis=0)
    logits = dec @ p["w_out"] + p["b_out"]
    probs = jax.nn.softmax(logits, axis=-1)
    reward = probs @ p["w_r"] + p["b_r"]
    return probs[None], reward[None]


if __name__ == "__main__":
    # Small, module-consistent sizes: output_size == hidden_size (see NOTE above).
    INPUT_SIZE = 16      # vocab
    HIDDEN = 128
    OUTPUT_SIZE = 128
    REWARD_SIZE = 8
    B, S = 2, 8

    key = jax.random.PRNGKey(0)
    k_tok, k_par = jax.random.split(key)
    tokens = jax.random.randint(k_tok, (B, S), 0, INPUT_SIZE, dtype=jnp.int32)
    params = init_params(k_par, INPUT_SIZE, HIDDEN, OUTPUT_SIZE, REWARD_SIZE)
    packed = pack_params(params)

    out, rew = hierarchical_forward(tokens, packed, REWARD_SIZE)
    out = jax.block_until_ready(out)
    rew = jax.block_until_ready(rew)

    ref_out, ref_rew = reference_forward(tokens, params)
    # Tolerance loosened vs. the pure-f32 version: kernel matmul operands are
    # bf16 (f32 accumulation) and the softmax reciprocal uses the EUP approx op.
    np.testing.assert_allclose(np.asarray(out), np.asarray(ref_out), rtol=5e-2, atol=2e-3)
    np.testing.assert_allclose(np.asarray(rew), np.asarray(ref_rew), rtol=5e-2, atol=2e-3)

    print("KERNEL_OK")
</pallas_src>

<mosaic_0001>
module attributes {stable_mosaic.version = 11 : i64} {
  func.func @hnn_kernel(%arg0: memref<64x1xi32, #tpu.memory_space<vmem>>, %arg1: memref<128x128xbf16, #tpu.memory_space<vmem>>, %arg2: memref<128x128xbf16, #tpu.memory_space<vmem>>, %arg3: memref<128x128xbf16, #tpu.memory_space<vmem>>, %arg4: memref<1x128xf32, #tpu.memory_space<vmem>>, %arg5: memref<128x128xbf16, #tpu.memory_space<vmem>>, %arg6: memref<128x128xbf16, #tpu.memory_space<vmem>>, %arg7: memref<1x128xf32, #tpu.memory_space<vmem>>, %arg8: memref<128x128xbf16, #tpu.memory_space<vmem>>, %arg9: memref<1x128xf32, #tpu.memory_space<vmem>>, %arg10: memref<128x128xbf16, #tpu.memory_space<vmem>>, %arg11: memref<1x128xf32, #tpu.memory_space<vmem>>, %arg12: memref<8x128xf32, #tpu.memory_space<vmem>>, %arg13: memref<8x128xf32, #tpu.memory_space<vmem>>) attributes {dimension_semantics = [], scalar_prefetch = 0 : i64, scratch_operands = 0 : i64, tpu.core_type = #tpu.core_type<tc>} {
    %c0 = arith.constant 0 : index
    %c0_0 = arith.constant 0 : index
    %0 = vector.load %arg1[%c0, %c0_0] : memref<128x128xbf16, #tpu.memory_space<vmem>>, vector<128x128xbf16>
    %c0_1 = arith.constant 0 : index
    %c0_2 = arith.constant 0 : index
    %1 = vector.load %arg2[%c0_1, %c0_2] : memref<128x128xbf16, #tpu.memory_space<vmem>>, vector<128x128xbf16>
    %cst = arith.constant dense<0.000000e+00> : vector<128x128xf32>
    %2 = tpu.matmul %0, %1, %cst {dimension_numbers = #tpu.dot_dimension_numbers<[1], [0], [0], [1], [0, 0, 1, 1], [], []>} : vector<128x128xbf16>, vector<128x128xbf16>, vector<128x128xf32> -> vector<128x128xf32>
    %c0_3 = arith.constant 0 : index
    %c0_4 = arith.constant 0 : index
    %3 = vector.load %arg4[%c0_3, %c0_4] : memref<1x128xf32, #tpu.memory_space<vmem>>, vector<1x128xf32>
    %4 = vector.broadcast %3 : vector<1x128xf32> to vector<128x128xf32>
    %5 = arith.addf %2, %4 : vector<128x128xf32>
    %6 = arith.truncf %5 : vector<128x128xf32> to vector<128x128xbf16>
    %7 = tpu.iota {dimensions = array<i32: 1>} : vector<64x128xi32>
    %c0_5 = arith.constant 0 : index
    %c0_6 = arith.constant 0 : index
    %8 = vector.load %arg0[%c0_5, %c0_6] : memref<64x1xi32, #tpu.memory_space<vmem>>, vector<64x1xi32>
    %9 = vector.broadcast %8 : vector<64x1xi32> to vector<64x128xi32>
    %10 = arith.cmpi eq, %7, %9 : vector<64x128xi32>
    %cst_7 = arith.constant 1.000000e+00 : f32
    %cst_8 = arith.constant 0.000000e+00 : f32
    %11 = vector.broadcast %cst_7 : f32 to vector<64x128xf32>
    %12 = vector.broadcast %cst_8 : f32 to vector<64x128xf32>
    %13 = arith.select %10, %11, %12 : vector<64x128xi1>, vector<64x128xf32>
    %14 = arith.truncf %13 : vector<64x128xf32> to vector<64x128xbf16>
    %cst_9 = arith.constant dense<0.000000e+00> : vector<64x128xf32>
    %15 = tpu.matmul %14, %6, %cst_9 {dimension_numbers = #tpu.dot_dimension_numbers<[1], [0], [0], [1], [0, 0, 1, 1], [], []>} : vector<64x128xbf16>, vector<128x128xbf16>, vector<64x128xf32> -> vector<64x128xf32>
    %c0_10 = arith.constant 0 : index
    %c0_11 = arith.constant 0 : index
    %16 = vector.load %arg3[%c0_10, %c0_11] : memref<128x128xbf16, #tpu.memory_space<vmem>>, vector<128x128xbf16>
    %cst_12 = arith.constant 0.000000e+00 : f32
    %17 = vector.broadcast %cst_12 : f32 to vector<8x128xf32>
    %18 = vector.extract_strided_slice %15 {offsets = [0, 0], sizes = [8, 128], strides = [1, 1]} : vector<64x128xf32> to vector<8x128xf32>
    %19 = arith.truncf %17 : vector<8x128xf32> to vector<8x128xbf16>
    %cst_13 = arith.constant dense<0.000000e+00> : vector<8x128xf32>
    %20 = tpu.matmul %19, %16, %cst_13 {dimension_numbers = #tpu.dot_dimension_numbers<[1], [0], [0], [1], [0, 0, 1, 1], [], []>} : vector<8x128xbf16>, vector<128x128xbf16>, vector<8x128xf32> -> vector<8x128xf32>
    %21 = arith.addf %18, %20 : vector<8x128xf32>
    %22 = math.tanh %21 : vector<8x128xf32>
    %23 = vector.extract_strided_slice %15 {offsets = [8, 0], sizes = [8, 128], strides = [1, 1]} : vector<64x128xf32> to vector<8x128xf32>
    %24 = arith.truncf %22 : vector<8x128xf32> to vector<8x128xbf16>
    %cst_14 = arith.constant dense<0.000000e+00> : vector<8x128xf32>
    %25 = tpu.matmul %24, %16, %cst_14 {dimension_numbers = #tpu.dot_dimension_numbers<[1], [0], [0], [1], [0, 0, 1, 1], [], []>} : vector<8x128xbf16>, vector<128x128xbf16>, vector<8x128xf32> -> vector<8x128xf32>
    %26 = arith.addf %23, %25 : vector<8x128xf32>
    %27 = math.tanh %26 : vector<8x128xf32>
    %28 = vector.extract_strided_slice %15 {offsets = [16, 0], sizes = [8, 128], strides = [1, 1]} : vector<64x128xf32> to vector<8x128xf32>
    %29 = arith.truncf %27 : vector<8x128xf32> to vector<8x128xbf16>
    %cst_15 = arith.constant dense<0.000000e+00> : vector<8x128xf32>
    %30 = tpu.matmul %29, %16, %cst_15 {dimension_numbers = #tpu.dot_dimension_numbers<[1], [0], [0], [1], [0, 0, 1, 1], [], []>} : vector<8x128xbf16>, vector<128x128xbf16>, vector<8x128xf32> -> vector<8x128xf32>
    %31 = arith.addf %28, %30 : vector<8x128xf32>
    %32 = math.tanh %31 : vector<8x128xf32>
    %33 = vector.extract_strided_slice %15 {offsets = [24, 0], sizes = [8, 128], strides = [1, 1]} : vector<64x128xf32> to vector<8x128xf32>
    %34 = arith.truncf %32 : vector<8x128xf32> to vector<8x128xbf16>
    %cst_16 = arith.constant dense<0.000000e+00> : vector<8x128xf32>
    %35 = tpu.matmul %34, %16, %cst_16 {dimension_numbers = #tpu.dot_dimension_numbers<[1], [0], [0], [1], [0, 0, 1, 1], [], []>} : vector<8x128xbf16>, vector<128x128xbf16>, vector<8x128xf32> -> vector<8x128xf32>
    %36 = arith.addf %33, %35 : vector<8x128xf32>
    %37 = math.tanh %36 : vector<8x128xf32>
    %38 = vector.extract_strided_slice %15 {offsets = [32, 0], sizes = [8, 128], strides = [1, 1]} : vector<64x128xf32> to vector<8x128xf32>
    %39 = arith.truncf %37 : vector<8x128xf32> to vector<8x128xbf16>
    %cst_17 = arith.constant dense<0.000000e+00> : vector<8x128xf32>
    %40 = tpu.matmul %39, %16, %cst_17 {dimension_numbers = #tpu.dot_dimension_numbers<[1], [0], [0], [1], [0, 0, 1, 1], [], []>} : vector<8x128xbf16>, vector<128x128xbf16>, vector<8x128xf32> -> vector<8x128xf32>
    %41 = arith.addf %38, %40 : vector<8x128xf32>
    %42 = math.tanh %41 : vector<8x128xf32>
    %43 = vector.extract_strided_slice %15 {offsets = [40, 0], sizes = [8, 128], strides = [1, 1]} : vector<64x128xf32> to vector<8x128xf32>
    %44 = arith.truncf %42 : vector<8x128xf32> to vector<8x128xbf16>
    %cst_18 = arith.constant dense<0.000000e+00> : vector<8x128xf32>
    %45 = tpu.matmul %44, %16, %cst_18 {dimension_numbers = #tpu.dot_dimension_numbers<[1], [0], [0], [1], [0, 0, 1, 1], [], []>} : vector<8x128xbf16>, vector<128x128xbf16>, vector<8x128xf32> -> vector<8x128xf32>
    %46 = arith.addf %43, %45 : vector<8x128xf32>
    %47 = math.tanh %46 : vector<8x128xf32>
    %48 = vector.extract_strided_slice %15 {offsets = [48, 0], sizes = [8, 128], strides = [1, 1]} : vector<64x128xf32> to vector<8x128xf32>
    %49 = arith.truncf %47 : vector<8x128xf32> to vector<8x128xbf16>
    %cst_19 = arith.constant dense<0.000000e+00> : vector<8x128xf32>
    %50 = tpu.matmul %49, %16, %cst_19 {dimension_numbers = #tpu.dot_dimension_numbers<[1], [0], [0], [1], [0, 0, 1, 1], [], []>} : vector<8x128xbf16>, vector<128x128xbf16>, vector<8x128xf32> -> vector<8x128xf32>
    %51 = arith.addf %48, %50 : vector<8x128xf32>
    %52 = math.tanh %51 : vector<8x128xf32>
    %53 = vector.extract_strided_slice %15 {offsets = [56, 0], sizes = [8, 128], strides = [1, 1]} : vector<64x128xf32> to vector<8x128xf32>
    %54 = arith.truncf %52 : vector<8x128xf32> to vector<8x128xbf16>
    %cst_20 = arith.constant dense<0.000000e+00> : vector<8x128xf32>
    %55 = tpu.matmul %54, %16, %cst_20 {dimension_numbers = #tpu.dot_dimension_numbers<[1], [0], [0], [1], [0, 0, 1, 1], [], []>} : vector<8x128xbf16>, vector<128x128xbf16>, vector<8x128xf32> -> vector<8x128xf32>
    %56 = arith.addf %53, %55 : vector<8x128xf32>
    %57 = math.tanh %56 : vector<8x128xf32>
    %58 = arith.truncf %57 : vector<8x128xf32> to vector<8x128xbf16>
    %c0_21 = arith.constant 0 : index
    %c0_22 = arith.constant 0 : index
    %59 = vector.load %arg5[%c0_21, %c0_22] : memref<128x128xbf16, #tpu.memory_space<vmem>>, vector<128x128xbf16>
    %cst_23 = arith.constant dense<0.000000e+00> : vector<8x128xf32>
    %60 = tpu.matmul %58, %59, %cst_23 {dimension_numbers = #tpu.dot_dimension_numbers<[1], [0], [0], [1], [0, 0, 1, 1], [], []>} : vector<8x128xbf16>, vector<128x128xbf16>, vector<8x128xf32> -> vector<8x128xf32>
    %c0_24 = arith.constant 0 : index
    %c0_25 = arith.constant 0 : index
    %61 = vector.load %arg7[%c0_24, %c0_25] : memref<1x128xf32, #tpu.memory_space<vmem>>, vector<1x128xf32>
    %62 = vector.broadcast %61 : vector<1x128xf32> to vector<8x128xf32>
    %63 = arith.addf %60, %62 : vector<8x128xf32>
    %c0_26 = arith.constant 0 : index
    %c0_27 = arith.constant 0 : index
    %64 = vector.load %arg6[%c0_26, %c0_27] : memref<128x128xbf16, #tpu.memory_space<vmem>>, vector<128x128xbf16>
    %65 = tpu.iota {dimensions = array<i32: 0>} : vector<8x128xi32>
    %cst_28 = arith.constant 0.000000e+00 : f32
    %66 = vector.broadcast %cst_28 : f32 to vector<1x128xf32>
    %cst_29 = arith.constant 0.000000e+00 : f32
    %67 = vector.broadcast %cst_29 : f32 to vector<8x128xf32>
    %68 = vector.extract_strided_slice %63 {offsets = [0, 0], sizes = [1, 128], strides = [1, 1]} : vector<8x128xf32> to vector<1x128xf32>
    %69 = arith.truncf %66 : vector<1x128xf32> to vector<1x128xbf16>
    %cst_30 = arith.constant dense<0.000000e+00> : vector<1x128xf32>
    %70 = tpu.matmul %69, %64, %cst_30 {dimension_numbers = #tpu.dot_dimension_numbers<[1], [0], [0], [1], [0, 0, 1, 1], [], []>} : vector<1x128xbf16>, vector<128x128xbf16>, vector<1x128xf32> -> vector<1x128xf32>
    %71 = arith.addf %68, %70 : vector<1x128xf32>
    %72 = math.tanh %71 : vector<1x128xf32>
    %c0_i32 = arith.constant 0 : i32
    %73 = vector.broadcast %c0_i32 : i32 to vector<8x128xi32>
    %74 = arith.cmpi eq, %65, %73 : vector<8x128xi32>
    %75 = vector.shape_cast %72 : vector<1x128xf32> to vector<1x128xf32>
    %76 = vector.broadcast %75 : vector<1x128xf32> to vector<8x128xf32>
    %77 = arith.select %74, %76, %67 : vector<8x128xi1>, vector<8x128xf32>
    %78 = vector.extract_strided_slice %63 {offsets = [1, 0], sizes = [1, 128], strides = [1, 1]} : vector<8x128xf32> to vector<1x128xf32>
    %79 = arith.truncf %72 : vector<1x128xf32> to vector<1x128xbf16>
    %cst_31 = arith.constant dense<0.000000e+00> : vector<1x128xf32>
    %80 = tpu.matmul %79, %64, %cst_31 {dimension_numbers = #tpu.dot_dimension_numbers<[1], [0], [0], [1], [0, 0, 1, 1], [], []>} : vector<1x128xbf16>, vector<128x128xbf16>, vector<1x128xf32> -> vector<1x128xf32>
    %81 = arith.addf %78, %80 : vector<1x128xf32>
    %82 = math.tanh %81 : vector<1x128xf32>
    %c1_i32 = arith.constant 1 : i32
    %83 = vector.broadcast %c1_i32 : i32 to vector<8x128xi32>
    %84 = arith.cmpi eq, %65, %83 : vector<8x128xi32>
    %85 = vector.shape_cast %82 : vector<1x128xf32> to vector<1x128xf32>
    %86 = vector.broadcast %85 : vector<1x128xf32> to vector<8x128xf32>
    %87 = arith.select %84, %86, %77 : vector<8x128xi1>, vector<8x128xf32>
    %88 = arith.truncf %87 : vector<8x128xf32> to vector<8x128xbf16>
    %c0_32 = arith.constant 0 : index
    %c0_33 = arith.constant 0 : index
    %89 = vector.load %arg8[%c0_32, %c0_33] : memref<128x128xbf16, #tpu.memory_space<vmem>>, vector<128x128xbf16>
    %cst_34 = arith.constant dense<0.000000e+00> : vector<8x128xf32>
    %90 = tpu.matmul %88, %89, %cst_34 {dimension_numbers = #tpu.dot_dimension_numbers<[1], [0], [0], [1], [0, 0, 1, 1], [], []>} : vector<8x128xbf16>, vector<128x128xbf16>, vector<8x128xf32> -> vector<8x128xf32>
    %c0_35 = arith.constant 0 : index
    %c0_36 = arith.constant 0 : index
    %91 = vector.load %arg9[%c0_35, %c0_36] : memref<1x128xf32, #tpu.memory_space<vmem>>, vector<1x128xf32>
    %92 = vector.broadcast %91 : vector<1x128xf32> to vector<8x128xf32>
    %93 = arith.addf %90, %92 : vector<8x128xf32>
    %cst_37 = arith.constant dense<0xFF800000> : vector<8xf32>
    %94 = vector.multi_reduction <maximumf>, %93, %cst_37 [1] : vector<8x128xf32> to vector<8xf32>
    %95 = vector.shape_cast %94 : vector<8xf32> to vector<8x1xf32>
    %96 = vector.broadcast %95 : vector<8x1xf32> to vector<8x128xf32>
    %97 = arith.subf %93, %96 : vector<8x128xf32>
    %98 = math.exp %97 : vector<8x128xf32>
    %cst_38 = arith.constant dense<0.000000e+00> : vector<8xf32>
    %99 = vector.multi_reduction <add>, %98, %cst_38 [1] : vector<8x128xf32> to vector<8xf32>
    %100 = vector.shape_cast %99 : vector<8xf32> to vector<8x1xf32>
    %101 = tpu.reciprocal %100 {approx = true} : vector<8x1xf32> -> vector<8x1xf32>
    %102 = vector.broadcast %101 : vector<8x1xf32> to vector<8x128xf32>
    %103 = arith.mulf %98, %102 : vector<8x128xf32>
    %c0_39 = arith.constant 0 : index
    %c0_40 = arith.constant 0 : index
    %104 = vector.load %arg12[%c0_39, %c0_40] : memref<8x128xf32, #tpu.memory_space<vmem>>, vector<8x128xf32>
    tpu.vector_store %arg12[%c0_39, %c0_40], %103 {strides = array<i32>} : memref<8x128xf32, #tpu.memory_space<vmem>>, vector<8x128xf32>,
    %105 = arith.truncf %103 : vector<8x128xf32> to vector<8x128xbf16>
    %c0_41 = arith.constant 0 : index
    %c0_42 = arith.constant 0 : index
    %106 = vector.load %arg10[%c0_41, %c0_42] : memref<128x128xbf16, #tpu.memory_space<vmem>>, vector<128x128xbf16>
    %cst_43 = arith.constant dense<0.000000e+00> : vector<8x128xf32>
    %107 = tpu.matmul %105, %106, %cst_43 {dimension_numbers = #tpu.dot_dimension_numbers<[1], [0], [0], [1], [0, 0, 1, 1], [], []>} : vector<8x128xbf16>, vector<128x128xbf16>, vector<8x128xf32> -> vector<8x128xf32>
    %c0_44 = arith.constant 0 : index
    %c0_45 = arith.constant 0 : index
    %108 = vector.load %arg11[%c0_44, %c0_45] : memref<1x128xf32, #tpu.memory_space<vmem>>, vector<1x128xf32>
    %109 = vector.broadcast %108 : vector<1x128xf32> to vector<8x128xf32>
    %110 = arith.addf %107, %109 : vector<8x128xf32>
    %c0_46 = arith.constant 0 : index
    %c0_47 = arith.constant 0 : index
    %111 = vector.load %arg13[%c0_46, %c0_47] : memref<8x128xf32, #tpu.memory_space<vmem>>, vector<8x128xf32>
    tpu.vector_store %arg13[%c0_46, %c0_47], %110 {strides = array<i32>} : memref<8x128xf32, #tpu.memory_space<vmem>>, vector<8x128xf32>,
    return
  }
}

</mosaic_0001>

<llo_original>
// kernel: tpu_custom_call.1
$region0: #{tpu_custom_call.1}
  #allocation0 [shape = 'u32[]', space=smem, size = 0x4, offset = 0x4, fixed_abs, tag = 'smem constant byte address 0x4 - core index']
  #allocation1 [shape = 'u32[144,128]{1,0:T(1,128)}', space=vmem, size = 0x12000, scoped, tag = 'internal scratch']
  %s0 = inlined_call_operand.vmem [shape: s32[64,1], index: 0, kind: input, shape index: {}]
  %s1 = inlined_call_operand.vmem [shape: bf16[128,128], index: 1, kind: input, shape index: {}]
  %s2 = inlined_call_operand.hbm [shape: bf16[128,128], index: 2, kind: input, shape index: {}]
  %s3 = inlined_call_operand.hbm [shape: bf16[128,128], index: 3, kind: input, shape index: {}]
  %s4 = inlined_call_operand.vmem [shape: f32[1,128], index: 4, kind: input, shape index: {}]
  %s5 = inlined_call_operand.hbm [shape: bf16[128,128], index: 5, kind: input, shape index: {}]
  %s6 = inlined_call_operand.hbm [shape: bf16[128,128], index: 6, kind: input, shape index: {}]
  %s7 = inlined_call_operand.vmem [shape: f32[1,128], index: 7, kind: input, shape index: {}]
  %s8 = inlined_call_operand.hbm [shape: bf16[128,128], index: 8, kind: input, shape index: {}]
  %s9 = inlined_call_operand.vmem [shape: f32[1,128], index: 9, kind: input, shape index: {}]
  %s10 = inlined_call_operand.hbm [shape: bf16[128,128], index: 10, kind: input, shape index: {}]
  %s11 = inlined_call_operand.vmem [shape: f32[1,128], index: 11, kind: input, shape index: {}]
  %s12 = inlined_call_operand.hbm [shape: f32[8,128], index: 12, kind: output, shape index: {0}]
  %s13 = inlined_call_operand.hbm [shape: f32[8,128], index: 13, kind: output, shape index: {1}]
  %14 = xla_tuple %s12, %s13
  %s15 = sld [smem:[#allocation0]]
  $region90: #{tpu_custom_call.1} parent=0
    _
  %s17 = ssub.s32 1, %s15
  %s18 = scalar_select 0, %s17, %s15
  $region1: #{tpu_custom_call.1} parent=0
    #allocation2 [shape = 'u8[32768]{0}', space=vmem, size = 0x8000, scoped, tag = 'input window, operand 2, single buffered']
    #allocation3 [shape = 's32[1]{0}', space=sflag, size = 0x4, scoped, tag = 'scoped memory for tpu_custom_call.1']
    #allocation4 [shape = 's32[1]{0}', space=sflag, size = 0x4, scoped, tag = 'scoped memory for tpu_custom_call.1']
    #allocation5 [shape = 'u8[32768]{0}', space=vmem, size = 0x8000, scoped, tag = 'input window, operand 3, single buffered']
    #allocation6 [shape = 's32[1]{0}', space=sflag, size = 0x4, scoped, tag = 'scoped memory for tpu_custom_call.1']
    #allocation7 [shape = 'u8[32768]{0}', space=vmem, size = 0x8000, scoped, tag = 'input window, operand 5, single buffered']
    #allocation8 [shape = 'u8[32768]{0}', space=vmem, size = 0x8000, scoped, tag = 'input window, operand 6, single buffered']
    #allocation9 [shape = 's32[1]{0}', space=sflag, size = 0x4, scoped, tag = 'scoped memory for tpu_custom_call.1']
    #allocation10 [shape = 'u8[32768]{0}', space=vmem, size = 0x8000, scoped, tag = 'input window, operand 8, single buffered']
    #allocation11 [shape = 'u8[32768]{0}', space=vmem, size = 0x8000, scoped, tag = 'input window, operand 10, single buffered']
    #allocation12 [shape = 's32[1]{0}', space=sflag, size = 0x4, scoped, tag = 'scoped memory for tpu_custom_call.1']
    #allocation13 [shape = 'u8[4096]{0}', space=vmem, size = 0x1000, scoped, tag = 'output window, operand 0, single buffered']
    #allocation14 [shape = 'u8[4096]{0}', space=vmem, size = 0x1000, scoped, tag = 'output window, operand 1, single buffered']
    #allocation15 [shape = 's32[1]{0}', space=sflag, size = 0x4, scoped, tag = 'scoped memory for tpu_custom_call.1']
    %19 = vsyncpa [#allocation3], 0
    %20 = vsyncpa [#allocation6], 0
    %21 = vsyncpa [#allocation9], 0
    %22 = vsyncpa [#allocation12], 0
    %23 = vsyncpa [#allocation4], 0
    %24 = vsyncpa [#allocation15], 0
    // Predicated region
    $region2: #{tpu_custom_call.1} parent=1 // pred_check
      _
    $region3: #{tpu_custom_call.1} parent=1 // pred_check_branch
      %26 = sbr.rel (0) target = $region5
    $region4: #{tpu_custom_call.1} parent=1 // pred_region
      _
    $region5: #{tpu_custom_call.1} parent=1 // pred_fallthru
      _
    // Predicated region
    $region6: #{tpu_custom_call.1} parent=1 // pred_check
      _
    $region7: #{tpu_custom_call.1} parent=1 // pred_check_branch
      %28 = sbr.rel (0) target = $region9
    $region8: #{tpu_custom_call.1} parent=1 // pred_region
      _
    $region9: #{tpu_custom_call.1} parent=1 // pred_fallthru
      _
    // Predicated region
    $region10: #{tpu_custom_call.1} parent=1 // pred_check
      _
    $region11: #{tpu_custom_call.1} parent=1 // pred_check_branch
      %30 = sbr.rel (0) target = $region13
    $region12: #{tpu_custom_call.1} parent=1 // pred_region
      %s32 = ssub.s32 1024, 1024
      %33 = vsyncadd [#allocation3], %s32
      %s34 = sshll.u32 [#allocation2], 4
      %s35 = int_to_ptr.vmem [resolvable:$true] %s34
      %40 = dma.hbm_to_vmem [thread:$0]  %s2, 1024, %s35, [#allocation3], 64, 64, 4
    $region13: #{tpu_custom_call.1} parent=1 // pred_fallthru
      _
    // Predicated region
    $region14: #{tpu_custom_call.1} parent=1 // pred_check
      _
    $region15: #{tpu_custom_call.1} parent=1 // pred_check_branch
      %42 = sbr.rel (0) target = $region17
    $region16: #{tpu_custom_call.1} parent=1 // pred_region
      %s44 = ssub.s32 1024, 1024
      %45 = vsyncadd [#allocation6], %s44
      %s46 = sshll.u32 [#allocation5], 4
      %s47 = int_to_ptr.vmem [resolvable:$true] %s46
      %52 = dma.hbm_to_vmem [thread:$0]  %s3, 1024, %s47, [#allocation6], 64, 64, 4
    $region17: #{tpu_custom_call.1} parent=1 // pred_fallthru
      _
    // Predicated region
    $region18: #{tpu_custom_call.1} parent=1 // pred_check
      _
    $region19: #{tpu_custom_call.1} parent=1 // pred_check_branch
      %54 = sbr.rel (0) target = $region21
    $region20: #{tpu_custom_call.1} parent=1 // pred_region
      _
    $region21: #{tpu_custom_call.1} parent=1 // pred_fallthru
      _
    // Predicated region
    $region22: #{tpu_custom_call.1} parent=1 // pred_check
      _
    $region23: #{tpu_custom_call.1} parent=1 // pred_check_branch
      %56 = sbr.rel (0) target = $region25
    $region24: #{tpu_custom_call.1} parent=1 // pred_region
      %s58 = ssub.s32 1024, 1024
      %59 = vsyncadd [#allocation6], %s58
      %s60 = sshll.u32 [#allocation7], 4
      %s61 = int_to_ptr.vmem [resolvable:$true] %s60
      %66 = dma.hbm_to_vmem [thread:$0]  %s5, 1024, %s61, [#allocation6], 64, 64, 4
    $region25: #{tpu_custom_call.1} parent=1 // pred_fallthru
      _
    // Predicated region
    $region26: #{tpu_custom_call.1} parent=1 // pred_check
      _
    $region27: #{tpu_custom_call.1} parent=1 // pred_check_branch
      %68 = sbr.rel (0) target = $region29
    $region28: #{tpu_custom_call.1} parent=1 // pred_region
      %s70 = ssub.s32 1024, 1024
      %71 = vsyncadd [#allocation9], %s70
      %s72 = sshll.u32 [#allocation8], 4
      %s73 = int_to_ptr.vmem [resolvable:$true] %s72
      %78 = dma.hbm_to_vmem [thread:$0]  %s6, 1024, %s73, [#allocation9], 64, 64, 4
    $region29: #{tpu_custom_call.1} parent=1 // pred_fallthru
      _
    // Predicated region
    $region30: #{tpu_custom_call.1} parent=1 // pred_check
      _
    $region31: #{tpu_custom_call.1} parent=1 // pred_check_branch
      %80 = sbr.rel (0) target = $region33
    $region32: #{tpu_custom_call.1} parent=1 // pred_region
      _
    $region33: #{tpu_custom_call.1} parent=1 // pred_fallthru
      _
    // Predicated region
    $region34: #{tpu_custom_call.1} parent=1 // pred_check
      _
    $region35: #{tpu_custom_call.1} parent=1 // pred_check_branch
      %82 = sbr.rel (0) target = $region37
    $region36: #{tpu_custom_call.1} parent=1 // pred_region
      %s84 = ssub.s32 1024, 1024
      %85 = vsyncadd [#allocation9], %s84
      %s86 = sshll.u32 [#allocation10], 4
      %s87 = int_to_ptr.vmem [resolvable:$true] %s86
      %92 = dma.hbm_to_vmem [thread:$0]  %s8, 1024, %s87, [#allocation9], 64, 64, 4
    $region37: #{tpu_custom_call.1} parent=1 // pred_fallthru
      _
    // Predicated region
    $region38: #{tpu_custom_call.1} parent=1 // pred_check
      _
    $region39: #{tpu_custom_call.1} parent=1 // pred_check_branch
      %94 = sbr.rel (0) target = $region41
    $region40: #{tpu_custom_call.1} parent=1 // pred_region
      _
    $region41: #{tpu_custom_call.1} parent=1 // pred_fallthru
      _
    // Predicated region
    $region42: #{tpu_custom_call.1} parent=1 // pred_check
      _
    $region43: #{tpu_custom_call.1} parent=1 // pred_check_branch
      %96 = sbr.rel (0) target = $region45
    $region44: #{tpu_custom_call.1} parent=1 // pred_region
      %s98 = ssub.s32 1024, 1024
      %99 = vsyncadd [#allocation12], %s98
      %s100 = sshll.u32 [#allocation11], 4
      %s101 = int_to_ptr.vmem [resolvable:$true] %s100
      %106 = dma.hbm_to_vmem [thread:$0]  %s10, 1024, %s101, [#allocation12], 64, 64, 4
    $region45: #{tpu_custom_call.1} parent=1 // pred_fallthru
      _
    // Predicated region
    $region46: #{tpu_custom_call.1} parent=1 // pred_check
      _
    $region47: #{tpu_custom_call.1} parent=1 // pred_check_branch
      %108 = sbr.rel (0) target = $region49
    $region48: #{tpu_custom_call.1} parent=1 // pred_region
      _
    $region49: #{tpu_custom_call.1} parent=1 // pred_fallthru
      _
    // Predicated region
    $region50: #{tpu_custom_call.1} parent=1 // pred_check
      _
    $region51: #{tpu_custom_call.1} parent=1 // pred_check_branch
      %110 = sbr.rel (0) target = $region53
    $region52: #{tpu_custom_call.1} parent=1 // pred_region
      %111 = dma.done [#allocation3], 1024
    $region53: #{tpu_custom_call.1} parent=1 // pred_fallthru
      _
    // Predicated region
    $region54: #{tpu_custom_call.1} parent=1 // pred_check
      _
    $region55: #{tpu_custom_call.1} parent=1 // pred_check_branch
      %113 = sbr.rel (0) target = $region57
    $region56: #{tpu_custom_call.1} parent=1 // pred_region
      %114 = dma.done [#allocation6], 1024
    $region57: #{tpu_custom_call.1} parent=1 // pred_fallthru
      _
    // Predicated region
    $region58: #{tpu_custom_call.1} parent=1 // pred_check
      _
    $region59: #{tpu_custom_call.1} parent=1 // pred_check_branch
      %116 = sbr.rel (0) target = $region61
    $region60: #{tpu_custom_call.1} parent=1 // pred_region
      %117 = dma.done [#allocation6], 1024
    $region61: #{tpu_custom_call.1} parent=1 // pred_fallthru
      _
    // Predicated region
    $region62: #{tpu_custom_call.1} parent=1 // pred_check
      _
    $region63: #{tpu_custom_call.1} parent=1 // pred_check_branch
      %119 = sbr.rel (0) target = $region65
    $region64: #{tpu_custom_call.1} parent=1 // pred_region
      %120 = dma.done [#allocation9], 1024
    $region65: #{tpu_custom_call.1} parent=1 // pred_fallthru
      _
    // Predicated region
    $region66: #{tpu_custom_call.1} parent=1 // pred_check
      _
    $region67: #{tpu_custom_call.1} parent=1 // pred_check_branch
      %122 = sbr.rel (0) target = $region69
    $region68: #{tpu_custom_call.1} parent=1 // pred_region
      %123 = dma.done [#allocation9], 1024
    $region69: #{tpu_custom_call.1} parent=1 // pred_fallthru
      _
    // Predicated region
    $region70: #{tpu_custom_call.1} parent=1 // pred_check
      _
    $region71: #{tpu_custom_call.1} parent=1 // pred_check_branch
      %125 = sbr.rel (0) target = $region73
    $region72: #{tpu_custom_call.1} parent=1 // pred_region
      %126 = dma.done [#allocation12], 1024
    $region73: #{tpu_custom_call.1} parent=1 // pred_fallthru
      _
    %v128 = vld [vmem:[%s1] sm:$0xf]
    %v129 = vld [vmem:[%s1 + $0x4] sm:$0xf]
    %v130 = vld [vmem:[%s1 + $0x8] sm:$0xf]
    %v131 = vld [vmem:[%s1 + $0xc] sm:$0xf]
    %v132 = vld [vmem:[%s1 + $0x10] sm:$0xf]
    %v133 = vld [vmem:[%s1 + $0x14] sm:$0xf]
    %v134 = vld [vmem:[%s1 + $0x18] sm:$0xf]
    %v135 = vld [vmem:[%s1 + $0x1c] sm:$0xf]
    %v136 = vld [vmem:[%s1 + $0x20] sm:$0xf]
    %v137 = vld [vmem:[%s1 + $0x24] sm:$0xf]
    %v138 = vld [vmem:[%s1 + $0x28] sm:$0xf]
    %v139 = vld [vmem:[%s1 + $0x2c] sm:$0xf]
    %v140 = vld [vmem:[%s1 + $0x30] sm:$0xf]
    %v141 = vld [vmem:[%s1 + $0x34] sm:$0xf]
    %v142 = vld [vmem:[%s1 + $0x38] sm:$0xf]
    %v143 = vld [vmem:[%s1 + $0x3c] sm:$0xf]
    %v144 = vld [vmem:[#allocation2] sm:$0xf]
    %v145 = vld [vmem:[#allocation2 + $0x4] sm:$0xf]
    %v146 = vld [vmem:[#allocation2 + $0x8] sm:$0xf]
    %v147 = vld [vmem:[#allocation2 + $0xc] sm:$0xf]
    %v148 = vld [vmem:[#allocation2 + $0x10] sm:$0xf]
    %v149 = vld [vmem:[#allocation2 + $0x14] sm:$0xf]
    %v150 = vld [vmem:[#allocation2 + $0x18] sm:$0xf]
    %v151 = vld [vmem:[#allocation2 + $0x1c] sm:$0xf]
    %v152 = vld [vmem:[#allocation2 + $0x20] sm:$0xf]
    %v153 = vld [vmem:[#allocation2 + $0x24] sm:$0xf]
    %v154 = vld [vmem:[#allocation2 + $0x28] sm:$0xf]
    %v155 = vld [vmem:[#allocation2 + $0x2c] sm:$0xf]
    %v156 = vld [vmem:[#allocation2 + $0x30] sm:$0xf]
    %v157 = vld [vmem:[#allocation2 + $0x34] sm:$0xf]
    %v158 = vld [vmem:[#allocation2 + $0x38] sm:$0xf]
    %v159 = vld [vmem:[#allocation2 + $0x3c] sm:$0xf]
    %v160 = vld [vmem:[%s4] sm:$0x1]
    %v162 = vlaneseq
    %v163 = vshrl.u32 %v162, 7
    %v164 = vsub.s32 0, %v163
    %v165 = vrot.slane %v160, %v164
    %v183 = vunpack.c.l.b16 %v128
    %v184 = vunpack.c.l.b16 %v129
    %v185 = vunpack.c.l.b16 %v130
    %v186 = vunpack.c.l.b16 %v131
    %v187 = vunpack.c.l.b16 %v132
    %v188 = vunpack.c.l.b16 %v133
    %v189 = vunpack.c.l.b16 %v134
    %v190 = vunpack.c.l.b16 %v135
    %v191 = vunpack.c.l.b16 %v136
    %v192 = vunpack.c.l.b16 %v137
    %v193 = vunpack.c.l.b16 %v138
    %v194 = vunpack.c.l.b16 %v139
    %v195 = vunpack.c.l.b16 %v140
    %v196 = vunpack.c.l.b16 %v141
    %v197 = vunpack.c.l.b16 %v142
    %v198 = vunpack.c.l.b16 %v143
    %v199 = vpack.c.b16 %v184, %v183
    %v200 = vpack.c.b16 %v186, %v185
    %v201 = vpack.c.b16 %v188, %v187
    %v202 = vpack.c.b16 %v190, %v189
    %v203 = vpack.c.b16 %v192, %v191
    %v204 = vpack.c.b16 %v194, %v193
    %v205 = vpack.c.b16 %v196, %v195
    %v206 = vpack.c.b16 %v198, %v197
    %v231 = vunpack.c.l.b16 %v144
    %v232 = vunpack.c.l.b16 %v145
    %v233 = vunpack.c.l.b16 %v146
    %v234 = vunpack.c.l.b16 %v147
    %v235 = vunpack.c.l.b16 %v148
    %v236 = vunpack.c.l.b16 %v149
    %v237 = vunpack.c.l.b16 %v150
    %v238 = vunpack.c.l.b16 %v151
    %v239 = vunpack.c.l.b16 %v152
    %v240 = vunpack.c.l.b16 %v153
    %v241 = vunpack.c.l.b16 %v154
    %v242 = vunpack.c.l.b16 %v155
    %v243 = vunpack.c.l.b16 %v156
    %v244 = vunpack.c.l.b16 %v157
    %v245 = vunpack.c.l.b16 %v158
    %v246 = vunpack.c.l.b16 %v159
    %v247 = vpack.c.b16 %v232, %v231
    %v248 = vpack.c.b16 %v234, %v233
    %v249 = vpack.c.b16 %v236, %v235
    %v250 = vpack.c.b16 %v238, %v237
    %v251 = vpack.c.b16 %v240, %v239
    %v252 = vpack.c.b16 %v242, %v241
    %v253 = vpack.c.b16 %v244, %v243
    %v254 = vpack.c.b16 %v246, %v245
    %263 = vmatprep.subr.bf16.mxu0 0
    %264 = vmatpush1.bf16.msra.mxu0 %v254
    %265 = vmatprep.subr.bf16.mxu0 0
    %266 = vmatpush1.bf16.msra.mxu0 %v253
    %267 = vmatprep.subr.bf16.mxu0 0
    %268 = vmatpush1.bf16.msra.mxu0 %v252
    %269 = vmatprep.subr.bf16.mxu0 0
    %270 = vmatpush1.bf16.msra.mxu0 %v251
    %271 = vmatprep.subr.bf16.mxu0 0
    %272 = vmatpush1.bf16.msra.mxu0 %v250
    %273 = vmatprep.subr.bf16.mxu0 0
    %274 = vmatpush1.bf16.msra.mxu0 %v249
    %275 = vmatprep.subr.bf16.mxu0 0
    %276 = vmatpush1.bf16.msra.mxu0 %v248
    %277 = vmatprep.subr.bf16.mxu0 0
    %278 = vmatpush1.bf16.msra.mxu0 %v247
    %279 = vmatprep.subr.bf16.mxu0 0
    %280 = vmatpush2.bf16.msra.mxu0 0
    %281 = vmatprep.subr.bf16.mxu0 0
    %282 = vmatpush2.bf16.msra.mxu0 0
    %283 = vmatprep.subr.bf16.mxu0 0
    %284 = vmatpush2.bf16.msra.mxu0 0
    %285 = vmatprep.subr.bf16.mxu0 0
    %286 = vmatpush2.bf16.msra.mxu0 0
    %287 = vmatprep.subr.bf16.mxu0 0
    %288 = vmatpush2.bf16.msra.mxu0 0
    %289 = vmatprep.subr.bf16.mxu0 0
    %290 = vmatpush2.bf16.msra.mxu0 0
    %291 = vmatprep.subr.bf16.mxu0 0
    %292 = vmatpush2.bf16.msra.mxu0 0
    %293 = vmatprep.subr.bf16.mxu0 0
    %294 = vmatpush2.bf16.msra.mxu0 0
    %295 = vmatprep.mubr.bf16.mxu0 0
    %296 = vmatmul.mubr.bf16.gmra.mxu0 %v199
    %v297 = vpop.f32.mrf.mxu0
    %v298 = vadd.f32 %v165, %v297
    %v299 = vpop.f32.mrf.mxu0
    %v300 = vpop.f32.mrf.mxu0
    %v301 = vadd.f32 %v165, %v300
    %v302 = vpop.f32.mrf.mxu0
    %303 = vmatprep.mubr.bf16.mxu0 0
    %304 = vmatmul.mubr.bf16.gmra.mxu0 %v200
    %v305 = vpop.f32.mrf.mxu0
    %v306 = vadd.f32 %v165, %v305
    %v307 = vpop.f32.mrf.mxu0
    %v308 = vpop.f32.mrf.mxu0
    %v309 = vadd.f32 %v165, %v308
    %v310 = vpop.f32.mrf.mxu0
    %311 = vmatprep.mubr.bf16.mxu0 0
    %312 = vmatmul.mubr.bf16.gmra.mxu0 %v201
    %v313 = vpop.f32.mrf.mxu0
    %v314 = vadd.f32 %v165, %v313
    %v315 = vpop.f32.mrf.mxu0
    %v316 = vpop.f32.mrf.mxu0
    %v317 = vadd.f32 %v165, %v316
    %v318 = vpop.f32.mrf.mxu0
    %319 = vmatprep.mubr.bf16.mxu0 0
    %320 = vmatmul.mubr.bf16.gmra.mxu0 %v202
    %v321 = vpop.f32.mrf.mxu0
    %v322 = vadd.f32 %v165, %v321
    %v323 = vpop.f32.mrf.mxu0
    %v324 = vpop.f32.mrf.mxu0
    %v325 = vadd.f32 %v165, %v324
    %v326 = vpop.f32.mrf.mxu0
    %327 = vmatprep.mubr.bf16.mxu0 0
    %328 = vmatmul.mubr.bf16.gmra.mxu0 %v203
    %v329 = vpop.f32.mrf.mxu0
    %v330 = vadd.f32 %v165, %v329
    %v331 = vpop.f32.mrf.mxu0
    %v332 = vpop.f32.mrf.mxu0
    %v333 = vadd.f32 %v165, %v332
    %v334 = vpop.f32.mrf.mxu0
    %335 = vmatprep.mubr.bf16.mxu0 0
    %336 = vmatmul.mubr.bf16.gmra.mxu0 %v204
    %v337 = vpop.f32.mrf.mxu0
    %v338 = vadd.f32 %v165, %v337
    %v339 = vpop.f32.mrf.mxu0
    %v340 = vpop.f32.mrf.mxu0
    %v341 = vadd.f32 %v165, %v340
    %v342 = vpop.f32.mrf.mxu0
    %343 = vmatprep.mubr.bf16.mxu0 0
    %344 = vmatmul.mubr.bf16.gmra.mxu0 %v205
    %v345 = vpop.f32.mrf.mxu0
    %v346 = vadd.f32 %v165, %v345
    %v347 = vpop.f32.mrf.mxu0
    %v348 = vpop.f32.mrf.mxu0
    %v349 = vadd.f32 %v165, %v348
    %v350 = vpop.f32.mrf.mxu0
    %351 = vmatprep.mubr.bf16.mxu0 0
    %352 = vmatmul.mubr.bf16.gmra.mxu0 %v206
    %v353 = vpop.f32.mrf.mxu0
    %v354 = vadd.f32 %v165, %v353
    %v355 = vpop.f32.mrf.mxu0
    %v356 = vpop.f32.mrf.mxu0
    %v357 = vadd.f32 %v165, %v356
    %v358 = vpop.f32.mrf.mxu0
    %359 = vdwg.mxu0
    %v360 = vpack.c.bf16 %v301, %v298
    %v361 = vpack.c.bf16 %v309, %v306
    %v362 = vpack.c.bf16 %v317, %v314
    %v363 = vpack.c.bf16 %v325, %v322
    %v364 = vpack.c.bf16 %v333, %v330
    %v365 = vpack.c.bf16 %v341, %v338
    %v366 = vpack.c.bf16 %v349, %v346
    %v367 = vpack.c.bf16 %v357, %v354
    %v368 = vlaneseq
    %v369 = vand.u32 %v368, 127
    %v370 = vld [vmem:[%s0] sm:$0xff]
    %v371 = vld [vmem:[%s0 + $0x8] sm:$0xff]
    %v372 = vld [vmem:[%s0 + $0x10] sm:$0xff]
    %v373 = vld [vmem:[%s0 + $0x18] sm:$0xff]
    %v374 = vld [vmem:[%s0 + $0x20] sm:$0xff]
    %v375 = vld [vmem:[%s0 + $0x28] sm:$0xff]
    %v376 = vld [vmem:[%s0 + $0x30] sm:$0xff]
    %v377 = vld [vmem:[%s0 + $0x38] sm:$0xff]
    %378 = vset.pattern.permute.xlu0 0
    %379 = vperm.xlu0 %378, %v370
    %v380 = vpop.permute.xlu0 %379
    %381 = vset.pattern.permute.xlu0 0
    %382 = vperm.xlu0 %381, %v371
    %v383 = vpop.permute.xlu0 %382
    %384 = vset.pattern.permute.xlu0 0
    %385 = vperm.xlu0 %384, %v372
    %v386 = vpop.permute.xlu0 %385
    %387 = vset.pattern.permute.xlu0 0
    %388 = vperm.xlu0 %387, %v373
    %v389 = vpop.permute.xlu0 %388
    %390 = vset.pattern.permute.xlu0 0
    %391 = vperm.xlu0 %390, %v374
    %v392 = vpop.permute.xlu0 %391
    %393 = vset.pattern.permute.xlu0 0
    %394 = vperm.xlu0 %393, %v375
    %v395 = vpop.permute.xlu0 %394
    %396 = vset.pattern.permute.xlu0 0
    %397 = vperm.xlu0 %396, %v376
    %v398 = vpop.permute.xlu0 %397
    %399 = vset.pattern.permute.xlu0 0
    %400 = vperm.xlu0 %399, %v377
    %v401 = vpop.permute.xlu0 %400
    %vm402 = vcmp.eq.s32.totalorder %v369, %v380
    %vm403 = vcmp.eq.s32.totalorder %v369, %v383
    %vm404 = vcmp.eq.s32.totalorder %v369, %v386
    %vm405 = vcmp.eq.s32.totalorder %v369, %v389
    %vm406 = vcmp.eq.s32.totalorder %v369, %v392
    %vm407 = vcmp.eq.s32.totalorder %v369, %v395
    %vm408 = vcmp.eq.s32.totalorder %v369, %v398
    %vm409 = vcmp.eq.s32.totalorder %v369, %v401
    %v410 = vsel %vm402, 1.0, 0.0
    %v411 = vsel %vm403, 1.0, 0.0
    %v412 = vsel %vm404, 1.0, 0.0
    %v413 = vsel %vm405, 1.0, 0.0
    %v414 = vsel %vm406, 1.0, 0.0
    %v415 = vsel %vm407, 1.0, 0.0
    %v416 = vsel %vm408, 1.0, 0.0
    %v417 = vsel %vm409, 1.0, 0.0
    %v418 = vpack.c.bf16 %v411, %v410
    %v419 = vpack.c.bf16 %v413, %v412
    %v420 = vpack.c.bf16 %v415, %v414
    %v421 = vpack.c.bf16 %v417, %v416
    %422 = vmatprep.subr.bf16.mxu0 0
    %423 = vmatpush1.bf16.msra.mxu0 %v367
    %424 = vmatprep.subr.bf16.mxu0 0
    %425 = vmatpush1.bf16.msra.mxu0 %v366
    %426 = vmatprep.subr.bf16.mxu0 0
    %427 = vmatpush1.bf16.msra.mxu0 %v365
    %428 = vmatprep.subr.bf16.mxu0 0
    %429 = vmatpush1.bf16.msra.mxu0 %v364
    %430 = vmatprep.subr.bf16.mxu0 0
    %431 = vmatpush1.bf16.msra.mxu0 %v363
    %432 = vmatprep.subr.bf16.mxu0 0
    %433 = vmatpush1.bf16.msra.mxu0 %v362
    %434 = vmatprep.subr.bf16.mxu0 0
    %435 = vmatpush1.bf16.msra.mxu0 %v361
    %436 = vmatprep.subr.bf16.mxu0 0
    %437 = vmatpush1.bf16.msra.mxu0 %v360
    %438 = vmatprep.subr.bf16.mxu0 0
    %439 = vmatpush2.bf16.msra.mxu0 0
    %440 = vmatprep.subr.bf16.mxu0 0
    %441 = vmatpush2.bf16.msra.mxu0 0
    %442 = vmatprep.subr.bf16.mxu0 0
    %443 = vmatpush2.bf16.msra.mxu0 0
    %444 = vmatprep.subr.bf16.mxu0 0
    %445 = vmatpush2.bf16.msra.mxu0 0
    %446 = vmatprep.subr.bf16.mxu0 0
    %447 = vmatpush2.bf16.msra.mxu0 0
    %448 = vmatprep.subr.bf16.mxu0 0
    %449 = vmatpush2.bf16.msra.mxu0 0
    %450 = vmatprep.subr.bf16.mxu0 0
    %451 = vmatpush2.bf16.msra.mxu0 0
    %452 = vmatprep.subr.bf16.mxu0 0
    %453 = vmatpush2.bf16.msra.mxu0 0
    %454 = vmatprep.mubr.bf16.mxu0 0
    %455 = vmatmul.mubr.bf16.gmra.mxu0 %v418
    %v456 = vpop.f32.mrf.mxu0
    %v457 = vadd.f32 0.0, %v456
    %v458 = vpop.f32.mrf.mxu0
    %v459 = vpop.f32.mrf.mxu0
    %v460 = vadd.f32 0.0, %v459
    %v461 = vpop.f32.mrf.mxu0
    %462 = vmatprep.mubr.bf16.mxu0 0
    %463 = vmatmul.mubr.bf16.gmra.mxu0 %v419
    %v464 = vpop.f32.mrf.mxu0
    %v465 = vadd.f32 0.0, %v464
    %v466 = vpop.f32.mrf.mxu0
    %v467 = vpop.f32.mrf.mxu0
    %v468 = vadd.f32 0.0, %v467
    %v469 = vpop.f32.mrf.mxu0
    %470 = vmatprep.mubr.bf16.mxu0 0
    %471 = vmatmul.mubr.bf16.gmra.mxu0 %v420
    %v472 = vpop.f32.mrf.mxu0
    %v473 = vadd.f32 0.0, %v472
    %v474 = vpop.f32.mrf.mxu0
    %v475 = vpop.f32.mrf.mxu0
    %v476 = vadd.f32 0.0, %v475
    %v477 = vpop.f32.mrf.mxu0
    %478 = vmatprep.mubr.bf16.mxu0 0
    %479 = vmatmul.mubr.bf16.gmra.mxu0 %v421
    %v480 = vpop.f32.mrf.mxu0
    %v481 = vadd.f32 0.0, %v480
    %v482 = vpop.f32.mrf.mxu0
    %v483 = vpop.f32.mrf.mxu0
    %v484 = vadd.f32 0.0, %v483
    %v485 = vpop.f32.mrf.mxu0
    %486 = vdwg.mxu0
    %v487 = vld [vmem:[#allocation5] sm:$0xf]
    %v488 = vld [vmem:[#allocation5 + $0x4] sm:$0xf]
    %v489 = vld [vmem:[#allocation5 + $0x8] sm:$0xf]
    %v490 = vld [vmem:[#allocation5 + $0xc] sm:$0xf]
    %v491 = vld [vmem:[#allocation5 + $0x10] sm:$0xf]
    %v492 = vld [vmem:[#allocation5 + $0x14] sm:$0xf]
    %v493 = vld [vmem:[#allocation5 + $0x18] sm:$0xf]
    %v494 = vld [vmem:[#allocation5 + $0x1c] sm:$0xf]
    %v495 = vld [vmem:[#allocation5 + $0x20] sm:$0xf]
    %v496 = vld [vmem:[#allocation5 + $0x24] sm:$0xf]
    %v497 = vld [vmem:[#allocation5 + $0x28] sm:$0xf]
    %v498 = vld [vmem:[#allocation5 + $0x2c] sm:$0xf]
    %v499 = vld [vmem:[#allocation5 + $0x30] sm:$0xf]
    %v500 = vld [vmem:[#allocation5 + $0x34] sm:$0xf]
    %v501 = vld [vmem:[#allocation5 + $0x38] sm:$0xf]
    %v502 = vld [vmem:[#allocation5 + $0x3c] sm:$0xf]
    %v519 = vunpack.c.l.b16 %v487
    %v520 = vunpack.c.l.b16 %v488
    %v521 = vunpack.c.l.b16 %v489
    %v522 = vunpack.c.l.b16 %v490
    %v523 = vunpack.c.l.b16 %v491
    %v524 = vunpack.c.l.b16 %v492
    %v525 = vunpack.c.l.b16 %v493
    %v526 = vunpack.c.l.b16 %v494
    %v527 = vunpack.c.l.b16 %v495
    %v528 = vunpack.c.l.b16 %v496
    %v529 = vunpack.c.l.b16 %v497
    %v530 = vunpack.c.l.b16 %v498
    %v531 = vunpack.c.l.b16 %v499
    %v532 = vunpack.c.l.b16 %v500
    %v533 = vunpack.c.l.b16 %v501
    %v534 = vunpack.c.l.b16 %v502
    %v535 = vpack.c.b16 %v520, %v519
    %v536 = vpack.c.b16 %v522, %v521
    %v537 = vpack.c.b16 %v524, %v523
    %v538 = vpack.c.b16 %v526, %v525
    %v539 = vpack.c.b16 %v528, %v527
    %v540 = vpack.c.b16 %v530, %v529
    %v541 = vpack.c.b16 %v532, %v531
    %v542 = vpack.c.b16 %v534, %v533
    %551 = vmatprep.subr.bf16.mxu0 0
    %552 = vmatpush1.bf16.msra.mxu0 %v542
    %553 = vmatprep.subr.bf16.mxu0 0
    %554 = vmatpush1.bf16.msra.mxu0 %v541
    %555 = vmatprep.subr.bf16.mxu0 0
    %556 = vmatpush1.bf16.msra.mxu0 %v540
    %557 = vmatprep.subr.bf16.mxu0 0
    %558 = vmatpush1.bf16.msra.mxu0 %v539
    %559 = vmatprep.subr.bf16.mxu0 0
    %560 = vmatpush1.bf16.msra.mxu0 %v538
    %561 = vmatprep.subr.bf16.mxu0 0
    %562 = vmatpush1.bf16.msra.mxu0 %v537
    %563 = vmatprep.subr.bf16.mxu0 0
    %564 = vmatpush1.bf16.msra.mxu0 %v536
    %565 = vmatprep.subr.bf16.mxu0 0
    %566 = vmatpush1.bf16.msra.mxu0 %v535
    %567 = vmatprep.subr.bf16.mxu0 0
    %568 = vmatpush2.bf16.msra.mxu0 0
    %569 = vmatprep.subr.bf16.mxu0 0
    %570 = vmatpush2.bf16.msra.mxu0 0
    %571 = vmatprep.subr.bf16.mxu0 0
    %572 = vmatpush2.bf16.msra.mxu0 0
    %573 = vmatprep.subr.bf16.mxu0 0
    %574 = vmatpush2.bf16.msra.mxu0 0
    %575 = vmatprep.subr.bf16.mxu0 0
    %576 = vmatpush2.bf16.msra.mxu0 0
    %577 = vmatprep.subr.bf16.mxu0 0
    %578 = vmatpush2.bf16.msra.mxu0 0
    %579 = vmatprep.subr.bf16.mxu0 0
    %580 = vmatpush2.bf16.msra.mxu0 0
    %581 = vmatprep.subr.bf16.mxu0 0
    %582 = vmatpush2.bf16.msra.mxu0 0
    %583 = vmatprep.mubr.bf16.mxu0 0
    %584 = vmatmul.mubr.bf16.gmra.mxu0 0
    %v585 = vpop.f32.mrf.mxu0
    %v586 = vadd.f32 0.0, %v585
    %v587 = vpop.f32.mrf.mxu0
    %v588 = vpop.f32.mrf.mxu0
    %v589 = vpop.f32.mrf.mxu0
    %590 = vdwg.mxu0
    %v591 = vadd.f32 %v457, %v586
    %v592 = vtanh.pop %v591
    %v593 = vpack.c.bf16 %v592, %v592
    %594 = vmatprep.subr.bf16.mxu0 0
    %595 = vmatpush1.bf16.msra.mxu0 %v542
    %596 = vmatprep.subr.bf16.mxu0 0
    %597 = vmatpush1.bf16.msra.mxu0 %v541
    %598 = vmatprep.subr.bf16.mxu0 0
    %599 = vmatpush1.bf16.msra.mxu0 %v540
    %600 = vmatprep.subr.bf16.mxu0 0
    %601 = vmatpush1.bf16.msra.mxu0 %v539
    %602 = vmatprep.subr.bf16.mxu0 0
    %603 = vmatpush1.bf16.msra.mxu0 %v538
    %604 = vmatprep.subr.bf16.mxu0 0
    %605 = vmatpush1.bf16.msra.mxu0 %v537
    %606 = vmatprep.subr.bf16.mxu0 0
    %607 = vmatpush1.bf16.msra.mxu0 %v536
    %608 = vmatprep.subr.bf16.mxu0 0
    %609 = vmatpush1.bf16.msra.mxu0 %v535
    %610 = vmatprep.subr.bf16.mxu0 0
    %611 = vmatpush2.bf16.msra.mxu0 0
    %612 = vmatprep.subr.bf16.mxu0 0
    %613 = vmatpush2.bf16.msra.mxu0 0
    %614 = vmatprep.subr.bf16.mxu0 0
    %615 = vmatpush2.bf16.msra.mxu0 0
    %616 = vmatprep.subr.bf16.mxu0 0
    %617 = vmatpush2.bf16.msra.mxu0 0
    %618 = vmatprep.subr.bf16.mxu0 0
    %619 = vmatpush2.bf16.msra.mxu0 0
    %620 = vmatprep.subr.bf16.mxu0 0
    %621 = vmatpush2.bf16.msra.mxu0 0
    %622 = vmatprep.subr.bf16.mxu0 0
    %623 = vmatpush2.bf16.msra.mxu0 0
    %624 = vmatprep.subr.bf16.mxu0 0
    %625 = vmatpush2.bf16.msra.mxu0 0
    %626 = vmatprep.mubr.bf16.mxu0 0
    %627 = vmatmul.mubr.bf16.gmra.mxu0 %v593
    %v628 = vpop.f32.mrf.mxu0
    %v629 = vadd.f32 0.0, %v628
    %v630 = vpop.f32.mrf.mxu0
    %v631 = vpop.f32.mrf.mxu0
    %v632 = vpop.f32.mrf.mxu0
    %633 = vdwg.mxu0
    %v634 = vadd.f32 %v460, %v629
    %v635 = vtanh.pop %v634
    %v636 = vpack.c.bf16 %v635, %v635
    %637 = vmatprep.subr.bf16.mxu0 0
    %638 = vmatpush1.bf16.msra.mxu0 %v542
    %639 = vmatprep.subr.bf16.mxu0 0
    %640 = vmatpush1.bf16.msra.mxu0 %v541
    %641 = vmatprep.subr.bf16.mxu0 0
    %642 = vmatpush1.bf16.msra.mxu0 %v540
    %643 = vmatprep.subr.bf16.mxu0 0
    %644 = vmatpush1.bf16.msra.mxu0 %v539
    %645 = vmatprep.subr.bf16.mxu0 0
    %646 = vmatpush1.bf16.msra.mxu0 %v538
    %647 = vmatprep.subr.bf16.mxu0 0
    %648 = vmatpush1.bf16.msra.mxu0 %v537
    %649 = vmatprep.subr.bf16.mxu0 0
    %650 = vmatpush1.bf16.msra.mxu0 %v536
    %651 = vmatprep.subr.bf16.mxu0 0
    %652 = vmatpush1.bf16.msra.mxu0 %v535
    %653 = vmatprep.subr.bf16.mxu0 0
    %654 = vmatpush2.bf16.msra.mxu0 0
    %655 = vmatprep.subr.bf16.mxu0 0
    %656 = vmatpush2.bf16.msra.mxu0 0
    %657 = vmatprep.subr.bf16.mxu0 0
    %658 = vmatpush2.bf16.msra.mxu0 0
    %659 = vmatprep.subr.bf16.mxu0 0
    %660 = vmatpush2.bf16.msra.mxu0 0
    %661 = vmatprep.subr.bf16.mxu0 0
    %662 = vmatpush2.bf16.msra.mxu0 0
    %663 = vmatprep.subr.bf16.mxu0 0
    %664 = vmatpush2.bf16.msra.mxu0 0
    %665 = vmatprep.subr.bf16.mxu0 0
    %666 = vmatpush2.bf16.msra.mxu0 0
    %667 = vmatprep.subr.bf16.mxu0 0
    %668 = vmatpush2.bf16.msra.mxu0 0
    %669 = vmatprep.mubr.bf16.mxu0 0
    %670 = vmatmul.mubr.bf16.gmra.mxu0 %v636
    %v671 = vpop.f32.mrf.mxu0
    %v672 = vadd.f32 0.0, %v671
    %v673 = vpop.f32.mrf.mxu0
    %v674 = vpop.f32.mrf.mxu0
    %v675 = vpop.f32.mrf.mxu0
    %676 = vdwg.mxu0
    %v677 = vadd.f32 %v465, %v672
    %v678 = vtanh.pop %v677
    %v679 = vpack.c.bf16 %v678, %v678
    %680 = vmatprep.subr.bf16.mxu0 0
    %681 = vmatpush1.bf16.msra.mxu0 %v542
    %682 = vmatprep.subr.bf16.mxu0 0
    %683 = vmatpush1.bf16.msra.mxu0 %v541
    %684 = vmatprep.subr.bf16.mxu0 0
    %685 = vmatpush1.bf16.msra.mxu0 %v540
    %686 = vmatprep.subr.bf16.mxu0 0
    %687 = vmatpush1.bf16.msra.mxu0 %v539
    %688 = vmatprep.subr.bf16.mxu0 0
    %689 = vmatpush1.bf16.msra.mxu0 %v538
    %690 = vmatprep.subr.bf16.mxu0 0
    %691 = vmatpush1.bf16.msra.mxu0 %v537
    %692 = vmatprep.subr.bf16.mxu0 0
    %693 = vmatpush1.bf16.msra.mxu0 %v536
    %694 = vmatprep.subr.bf16.mxu0 0
    %695 = vmatpush1.bf16.msra.mxu0 %v535
    %696 = vmatprep.subr.bf16.mxu0 0
    %697 = vmatpush2.bf16.msra.mxu0 0
    %698 = vmatprep.subr.bf16.mxu0 0
    %699 = vmatpush2.bf16.msra.mxu0 0
    %700 = vmatprep.subr.bf16.mxu0 0
    %701 = vmatpush2.bf16.msra.mxu0 0
    %702 = vmatprep.subr.bf16.mxu0 0
    %703 = vmatpush2.bf16.msra.mxu0 0
    %704 = vmatprep.subr.bf16.mxu0 0
    %705 = vmatpush2.bf16.msra.mxu0 0
    %706 = vmatprep.subr.bf16.mxu0 0
    %707 = vmatpush2.bf16.msra.mxu0 0
    %708 = vmatprep.subr.bf16.mxu0 0
    %709 = vmatpush2.bf16.msra.mxu0 0
    %710 = vmatprep.subr.bf16.mxu0 0
    %711 = vmatpush2.bf16.msra.mxu0 0
    %712 = vmatprep.mubr.bf16.mxu0 0
    %713 = vmatmul.mubr.bf16.gmra.mxu0 %v679
    %v714 = vpop.f32.mrf.mxu0
    %v715 = vadd.f32 0.0, %v714
    %v716 = vpop.f32.mrf.mxu0
    %v717 = vpop.f32.mrf.mxu0
    %v718 = vpop.f32.mrf.mxu0
    %719 = vdwg.mxu0
    %v720 = vadd.f32 %v468, %v715
    %v721 = vtanh.pop %v720
    %v722 = vpack.c.bf16 %v721, %v721
    %723 = vmatprep.subr.bf16.mxu0 0
    %724 = vmatpush1.bf16.msra.mxu0 %v542
    %725 = vmatprep.subr.bf16.mxu0 0
    %726 = vmatpush1.bf16.msra.mxu0 %v541
    %727 = vmatprep.subr.bf16.mxu0 0
    %728 = vmatpush1.bf16.msra.mxu0 %v540
    %729 = vmatprep.subr.bf16.mxu0 0
    %730 = vmatpush1.bf16.msra.mxu0 %v539
    %731 = vmatprep.subr.bf16.mxu0 0
    %732 = vmatpush1.bf16.msra.mxu0 %v538
    %733 = vmatprep.subr.bf16.mxu0 0
    %734 = vmatpush1.bf16.msra.mxu0 %v537
    %735 = vmatprep.subr.bf16.mxu0 0
    %736 = vmatpush1.bf16.msra.mxu0 %v536
    %737 = vmatprep.subr.bf16.mxu0 0
    %738 = vmatpush1.bf16.msra.mxu0 %v535
    %739 = vmatprep.subr.bf16.mxu0 0
    %740 = vmatpush2.bf16.msra.mxu0 0
    %741 = vmatprep.subr.bf16.mxu0 0
    %742 = vmatpush2.bf16.msra.mxu0 0
    %743 = vmatprep.subr.bf16.mxu0 0
    %744 = vmatpush2.bf16.msra.mxu0 0
    %745 = vmatprep.subr.bf16.mxu0 0
    %746 = vmatpush2.bf16.msra.mxu0 0
    %747 = vmatprep.subr.bf16.mxu0 0
    %748 = vmatpush2.bf16.msra.mxu0 0
    %749 = vmatprep.subr.bf16.mxu0 0
    %750 = vmatpush2.bf16.msra.mxu0 0
    %751 = vmatprep.subr.bf16.mxu0 0
    %752 = vmatpush2.bf16.msra.mxu0 0
    %753 = vmatprep.subr.bf16.mxu0 0
    %754 = vmatpush2.bf16.msra.mxu0 0
    %755 = vmatprep.mubr.bf16.mxu0 0
    %756 = vmatmul.mubr.bf16.gmra.mxu0 %v722
    %v757 = vpop.f32.mrf.mxu0
    %v758 = vadd.f32 0.0, %v757
    %v759 = vpop.f32.mrf.mxu0
    %v760 = vpop.f32.mrf.mxu0
    %v761 = vpop.f32.mrf.mxu0
    %762 = vdwg.mxu0
    %v763 = vadd.f32 %v473, %v758
    %v764 = vtanh.pop %v763
    %v765 = vpack.c.bf16 %v764, %v764
    %766 = vmatprep.subr.bf16.mxu0 0
    %767 = vmatpush1.bf16.msra.mxu0 %v542
    %768 = vmatprep.subr.bf16.mxu0 0
    %769 = vmatpush1.bf16.msra.mxu0 %v541
    %770 = vmatprep.subr.bf16.mxu0 0
    %771 = vmatpush1.bf16.msra.mxu0 %v540
    %772 = vmatprep.subr.bf16.mxu0 0
    %773 = vmatpush1.bf16.msra.mxu0 %v539
    %774 = vmatprep.subr.bf16.mxu0 0
    %775 = vmatpush1.bf16.msra.mxu0 %v538
    %776 = vmatprep.subr.bf16.mxu0 0
    %777 = vmatpush1.bf16.msra.mxu0 %v537
    %778 = vmatprep.subr.bf16.mxu0 0
    %779 = vmatpush1.bf16.msra.mxu0 %v536
    %780 = vmatprep.subr.bf16.mxu0 0
    %781 = vmatpush1.bf16.msra.mxu0 %v535
    %782 = vmatprep.subr.bf16.mxu0 0
    %783 = vmatpush2.bf16.msra.mxu0 0
    %784 = vmatprep.subr.bf16.mxu0 0
    %785 = vmatpush2.bf16.msra.mxu0 0
    %786 = vmatprep.subr.bf16.mxu0 0
    %787 = vmatpush2.bf16.msra.mxu0 0
    %788 = vmatprep.subr.bf16.mxu0 0
    %789 = vmatpush2.bf16.msra.mxu0 0
    %790 = vmatprep.subr.bf16.mxu0 0
    %791 = vmatpush2.bf16.msra.mxu0 0
    %792 = vmatprep.subr.bf16.mxu0 0
    %793 = vmatpush2.bf16.msra.mxu0 0
    %794 = vmatprep.subr.bf16.mxu0 0
    %795 = vmatpush2.bf16.msra.mxu0 0
    %796 = vmatprep.subr.bf16.mxu0 0
    %797 = vmatpush2.bf16.msra.mxu0 0
    %798 = vmatprep.mubr.bf16.mxu0 0
    %799 = vmatmul.mubr.bf16.gmra.mxu0 %v765
    %v800 = vpop.f32.mrf.mxu0
    %v801 = vadd.f32 0.0, %v800
    %v802 = vpop.f32.mrf.mxu0
    %v803 = vpop.f32.mrf.mxu0
    %v804 = vpop.f32.mrf.mxu0
    %805 = vdwg.mxu0
    %v806 = vadd.f32 %v476, %v801
    %v807 = vtanh.pop %v806
    %v808 = vpack.c.bf16 %v807, %v807
    %809 = vmatprep.subr.bf16.mxu0 0
    %810 = vmatpush1.bf16.msra.mxu0 %v542
    %811 = vmatprep.subr.bf16.mxu0 0
    %812 = vmatpush1.bf16.msra.mxu0 %v541
    %813 = vmatprep.subr.bf16.mxu0 0
    %814 = vmatpush1.bf16.msra.mxu0 %v540
    %815 = vmatprep.subr.bf16.mxu0 0
    %816 = vmatpush1.bf16.msra.mxu0 %v539
    %817 = vmatprep.subr.bf16.mxu0 0
    %818 = vmatpush1.bf16.msra.mxu0 %v538
    %819 = vmatprep.subr.bf16.mxu0 0
    %820 = vmatpush1.bf16.msra.mxu0 %v537
    %821 = vmatprep.subr.bf16.mxu0 0
    %822 = vmatpush1.bf16.msra.mxu0 %v536
    %823 = vmatprep.subr.bf16.mxu0 0
    %824 = vmatpush1.bf16.msra.mxu0 %v535
    %825 = vmatprep.subr.bf16.mxu0 0
    %826 = vmatpush2.bf16.msra.mxu0 0
    %827 = vmatprep.subr.bf16.mxu0 0
    %828 = vmatpush2.bf16.msra.mxu0 0
    %829 = vmatprep.subr.bf16.mxu0 0
    %830 = vmatpush2.bf16.msra.mxu0 0
    %831 = vmatprep.subr.bf16.mxu0 0
    %832 = vmatpush2.bf16.msra.mxu0 0
    %833 = vmatprep.subr.bf16.mxu0 0
    %834 = vmatpush2.bf16.msra.mxu0 0
    %835 = vmatprep.subr.bf16.mxu0 0
    %836 = vmatpush2.bf16.msra.mxu0 0
    %837 = vmatprep.subr.bf16.mxu0 0
    %838 = vmatpush2.bf16.msra.mxu0 0
    %839 = vmatprep.subr.bf16.mxu0 0
    %840 = vmatpush2.bf16.msra.mxu0 0
    %841 = vmatprep.mubr.bf16.mxu0 0
    %842 = vmatmul.mubr.bf16.gmra.mxu0 %v808
    %v843 = vpop.f32.mrf.mxu0
    %v844 = vadd.f32 0.0, %v843
    %v845 = vpop.f32.mrf.mxu0
    %v846 = vpop.f32.mrf.mxu0
    %v847 = vpop.f32.mrf.mxu0
    %848 = vdwg.mxu0
    %v849 = vadd.f32 %v481, %v844
    %v850 = vtanh.pop %v849
    %v851 = vpack.c.bf16 %v850, %v850
    %852 = vmatprep.subr.bf16.mxu0 0
    %853 = vmatpush1.bf16.msra.mxu0 %v542
    %854 = vmatprep.subr.bf16.mxu0 0
    %855 = vmatpush1.bf16.msra.mxu0 %v541
    %856 = vmatprep.subr.bf16.mxu0 0
    %857 = vmatpush1.bf16.msra.mxu0 %v540
    %858 = vmatprep.subr.bf16.mxu0 0
    %859 = vmatpush1.bf16.msra.mxu0 %v539
    %860 = vmatprep.subr.bf16.mxu0 0
    %861 = vmatpush1.bf16.msra.mxu0 %v538
    %862 = vmatprep.subr.bf16.mxu0 0
    %863 = vmatpush1.bf16.msra.mxu0 %v537
    %864 = vmatprep.subr.bf16.mxu0 0
    %865 = vmatpush1.bf16.msra.mxu0 %v536
    %866 = vmatprep.subr.bf16.mxu0 0
    %867 = vmatpush1.bf16.msra.mxu0 %v535
    %868 = vmatprep.subr.bf16.mxu0 0
    %869 = vmatpush2.bf16.msra.mxu0 0
    %870 = vmatprep.subr.bf16.mxu0 0
    %871 = vmatpush2.bf16.msra.mxu0 0
    %872 = vmatprep.subr.bf16.mxu0 0
    %873 = vmatpush2.bf16.msra.mxu0 0
    %874 = vmatprep.subr.bf16.mxu0 0
    %875 = vmatpush2.bf16.msra.mxu0 0
    %876 = vmatprep.subr.bf16.mxu0 0
    %877 = vmatpush2.bf16.msra.mxu0 0
    %878 = vmatprep.subr.bf16.mxu0 0
    %879 = vmatpush2.bf16.msra.mxu0 0
    %880 = vmatprep.subr.bf16.mxu0 0
    %881 = vmatpush2.bf16.msra.mxu0 0
    %882 = vmatprep.subr.bf16.mxu0 0
    %883 = vmatpush2.bf16.msra.mxu0 0
    %884 = vmatprep.mubr.bf16.mxu0 0
    %885 = vmatmul.mubr.bf16.gmra.mxu0 %v851
    %v886 = vpop.f32.mrf.mxu0
    %v887 = vadd.f32 0.0, %v886
    %v888 = vpop.f32.mrf.mxu0
    %v889 = vpop.f32.mrf.mxu0
    %v890 = vpop.f32.mrf.mxu0
    %891 = vdwg.mxu0
    %v892 = vadd.f32 %v484, %v887
    %v893 = vtanh.pop %v892
    %v894 = vpack.c.bf16 %v893, %v893
    %v895 = vld [vmem:[#allocation7] sm:$0xf]
    %v896 = vld [vmem:[#allocation7 + $0x4] sm:$0xf]
    %v897 = vld [vmem:[#allocation7 + $0x8] sm:$0xf]
    %v898 = vld [vmem:[#allocation7 + $0xc] sm:$0xf]
    %v899 = vld [vmem:[#allocation7 + $0x10] sm:$0xf]
    %v900 = vld [vmem:[#allocation7 + $0x14] sm:$0xf]
    %v901 = vld [vmem:[#allocation7 + $0x18] sm:$0xf]
    %v902 = vld [vmem:[#allocation7 + $0x1c] sm:$0xf]
    %v903 = vld [vmem:[#allocation7 + $0x20] sm:$0xf]
    %v904 = vld [vmem:[#allocation7 + $0x24] sm:$0xf]
    %v905 = vld [vmem:[#allocation7 + $0x28] sm:$0xf]
    %v906 = vld [vmem:[#allocation7 + $0x2c] sm:$0xf]
    %v907 = vld [vmem:[#allocation7 + $0x30] sm:$0xf]
    %v908 = vld [vmem:[#allocation7 + $0x34] sm:$0xf]
    %v909 = vld [vmem:[#allocation7 + $0x38] sm:$0xf]
    %v910 = vld [vmem:[#allocation7 + $0x3c] sm:$0xf]
    %v911 = vld [vmem:[%s7] sm:$0x1]
    %v913 = vlaneseq
    %v914 = vshrl.u32 %v913, 7
    %v915 = vsub.s32 0, %v914
    %v916 = vrot.slane %v911, %v915
    %v934 = vunpack.c.l.b16 %v895
    %v935 = vunpack.c.l.b16 %v896
    %v936 = vunpack.c.l.b16 %v897
    %v937 = vunpack.c.l.b16 %v898
    %v938 = vunpack.c.l.b16 %v899
    %v939 = vunpack.c.l.b16 %v900
    %v940 = vunpack.c.l.b16 %v901
    %v941 = vunpack.c.l.b16 %v902
    %v942 = vunpack.c.l.b16 %v903
    %v943 = vunpack.c.l.b16 %v904
    %v944 = vunpack.c.l.b16 %v905
    %v945 = vunpack.c.l.b16 %v906
    %v946 = vunpack.c.l.b16 %v907
    %v947 = vunpack.c.l.b16 %v908
    %v948 = vunpack.c.l.b16 %v909
    %v949 = vunpack.c.l.b16 %v910
    %v950 = vpack.c.b16 %v935, %v934
    %v951 = vpack.c.b16 %v937, %v936
    %v952 = vpack.c.b16 %v939, %v938
    %v953 = vpack.c.b16 %v941, %v940
    %v954 = vpack.c.b16 %v943, %v942
    %v955 = vpack.c.b16 %v945, %v944
    %v956 = vpack.c.b16 %v947, %v946
    %v957 = vpack.c.b16 %v949, %v948
    %966 = vmatprep.subr.bf16.mxu0 0
    %967 = vmatpush1.bf16.msra.mxu0 %v957
    %968 = vmatprep.subr.bf16.mxu0 0
    %969 = vmatpush1.bf16.msra.mxu0 %v956
    %970 = vmatprep.subr.bf16.mxu0 0
    %971 = vmatpush1.bf16.msra.mxu0 %v955
    %972 = vmatprep.subr.bf16.mxu0 0
    %973 = vmatpush1.bf16.msra.mxu0 %v954
    %974 = vmatprep.subr.bf16.mxu0 0
    %975 = vmatpush1.bf16.msra.mxu0 %v953
    %976 = vmatprep.subr.bf16.mxu0 0
    %977 = vmatpush1.bf16.msra.mxu0 %v952
    %978 = vmatprep.subr.bf16.mxu0 0
    %979 = vmatpush1.bf16.msra.mxu0 %v951
    %980 = vmatprep.subr.bf16.mxu0 0
    %981 = vmatpush1.bf16.msra.mxu0 %v950
    %982 = vmatprep.subr.bf16.mxu0 0
    %983 = vmatpush2.bf16.msra.mxu0 0
    %984 = vmatprep.subr.bf16.mxu0 0
    %985 = vmatpush2.bf16.msra.mxu0 0
    %986 = vmatprep.subr.bf16.mxu0 0
    %987 = vmatpush2.bf16.msra.mxu0 0
    %988 = vmatprep.subr.bf16.mxu0 0
    %989 = vmatpush2.bf16.msra.mxu0 0
    %990 = vmatprep.subr.bf16.mxu0 0
    %991 = vmatpush2.bf16.msra.mxu0 0
    %992 = vmatprep.subr.bf16.mxu0 0
    %993 = vmatpush2.bf16.msra.mxu0 0
    %994 = vmatprep.subr.bf16.mxu0 0
    %995 = vmatpush2.bf16.msra.mxu0 0
    %996 = vmatprep.subr.bf16.mxu0 0
    %997 = vmatpush2.bf16.msra.mxu0 0
    %998 = vmatprep.mubr.bf16.mxu0 0
    %999 = vmatmul.mubr.bf16.gmra.mxu0 %v894
    %v1000 = vpop.f32.mrf.mxu0
    %v1001 = vadd.f32 %v916, %v1000
    %v1002 = vpop.f32.mrf.mxu0
    %v1003 = vpop.f32.mrf.mxu0
    %v1004 = vpop.f32.mrf.mxu0
    %1005 = vdwg.mxu0
    %v1006 = vld [vmem:[#allocation8] sm:$0xf]
    %v1007 = vld [vmem:[#allocation8 + $0x4] sm:$0xf]
    %v1008 = vld [vmem:[#allocation8 + $0x8] sm:$0xf]
    %v1009 = vld [vmem:[#allocation8 + $0xc] sm:$0xf]
    %v1010 = vld [vmem:[#allocation8 + $0x10] sm:$0xf]
    %v1011 = vld [vmem:[#allocation8 + $0x14] sm:$0xf]
    %v1012 = vld [vmem:[#allocation8 + $0x18] sm:$0xf]
    %v1013 = vld [vmem:[#allocation8 + $0x1c] sm:$0xf]
    %v1014 = vld [vmem:[#allocation8 + $0x20] sm:$0xf]
    %v1015 = vld [vmem:[#allocation8 + $0x24] sm:$0xf]
    %v1016 = vld [vmem:[#allocation8 + $0x28] sm:$0xf]
    %v1017 = vld [vmem:[#allocation8 + $0x2c] sm:$0xf]
    %v1018 = vld [vmem:[#allocation8 + $0x30] sm:$0xf]
    %v1019 = vld [vmem:[#allocation8 + $0x34] sm:$0xf]
    %v1020 = vld [vmem:[#allocation8 + $0x38] sm:$0xf]
    %v1021 = vld [vmem:[#allocation8 + $0x3c] sm:$0xf]
    %v1022 = vlaneseq
    %v1023 = vshrl.u32 %v1022, 7
    %v1040 = vunpack.c.l.b16 %v1006
    %v1041 = vunpack.c.l.b16 %v1007
    %v1042 = vunpack.c.l.b16 %v1008
    %v1043 = vunpack.c.l.b16 %v1009
    %v1044 = vunpack.c.l.b16 %v1010
    %v1045 = vunpack.c.l.b16 %v1011
    %v1046 = vunpack.c.l.b16 %v1012
    %v1047 = vunpack.c.l.b16 %v1013
    %v1048 = vunpack.c.l.b16 %v1014
    %v1049 = vunpack.c.l.b16 %v1015
    %v1050 = vunpack.c.l.b16 %v1016
    %v1051 = vunpack.c.l.b16 %v1017
    %v1052 = vunpack.c.l.b16 %v1018
    %v1053 = vunpack.c.l.b16 %v1019
    %v1054 = vunpack.c.l.b16 %v1020
    %v1055 = vunpack.c.l.b16 %v1021
    %v1056 = vpack.c.b16 %v1041, %v1040
    %v1057 = vpack.c.b16 %v1043, %v1042
    %v1058 = vpack.c.b16 %v1045, %v1044
    %v1059 = vpack.c.b16 %v1047, %v1046
    %v1060 = vpack.c.b16 %v1049, %v1048
    %v1061 = vpack.c.b16 %v1051, %v1050
    %v1062 = vpack.c.b16 %v1053, %v1052
    %v1063 = vpack.c.b16 %v1055, %v1054
    %1072 = vmatprep.subr.bf16.mxu0 0
    %1073 = vmatpush1.bf16.msra.mxu0 %v1063
    %1074 = vmatprep.subr.bf16.mxu0 0
    %1075 = vmatpush1.bf16.msra.mxu0 %v1062
    %1076 = vmatprep.subr.bf16.mxu0 0
    %1077 = vmatpush1.bf16.msra.mxu0 %v1061
    %1078 = vmatprep.subr.bf16.mxu0 0
    %1079 = vmatpush1.bf16.msra.mxu0 %v1060
    %1080 = vmatprep.subr.bf16.mxu0 0
    %1081 = vmatpush1.bf16.msra.mxu0 %v1059
    %1082 = vmatprep.subr.bf16.mxu0 0
    %1083 = vmatpush1.bf16.msra.mxu0 %v1058
    %1084 = vmatprep.subr.bf16.mxu0 0
    %1085 = vmatpush1.bf16.msra.mxu0 %v1057
    %1086 = vmatprep.subr.bf16.mxu0 0
    %1087 = vmatpush1.bf16.msra.mxu0 %v1056
    %1088 = vmatprep.subr.bf16.mxu0 0
    %1089 = vmatpush2.bf16.msra.mxu0 0
    %1090 = vmatprep.subr.bf16.mxu0 0
    %1091 = vmatpush2.bf16.msra.mxu0 0
    %1092 = vmatprep.subr.bf16.mxu0 0
    %1093 = vmatpush2.bf16.msra.mxu0 0
    %1094 = vmatprep.subr.bf16.mxu0 0
    %1095 = vmatpush2.bf16.msra.mxu0 0
    %1096 = vmatprep.subr.bf16.mxu0 0
    %1097 = vmatpush2.bf16.msra.mxu0 0
    %1098 = vmatprep.subr.bf16.mxu0 0
    %1099 = vmatpush2.bf16.msra.mxu0 0
    %1100 = vmatprep.subr.bf16.mxu0 0
    %1101 = vmatpush2.bf16.msra.mxu0 0
    %1102 = vmatprep.subr.bf16.mxu0 0
    %1103 = vmatpush2.bf16.msra.mxu0 0
    %1104 = vmatprep.mubr.bf16.mxu0 0
    %1105 = vmatmul.mubr.bf16.gmra.mxu0 0
    %v1106 = vpop.f32.mrf.mxu0
    %v1107 = vadd.f32 0.0, %v1106
    %v1108 = vpop.f32.mrf.mxu0
    %v1109 = vpop.f32.mrf.mxu0
    %v1110 = vpop.f32.mrf.mxu0
    %1111 = vdwg.mxu0
    %v1112 = vadd.f32 %v1001, %v1107
    %v1113 = vtanh.pop %v1112
    %vm1114 = vcmp.eq.s32.totalorder %v1023, 0
    %v1115 = vlaneseq
    %v1116 = vshrl.u32 %v1115, 7
    %v1117 = vsub.s32 0, %v1116
    %v1118 = vrot.slane %v1113, %v1117
    %v1119 = vsel %vm1114, %v1118, 0.0
    %v1120 = vpack.c.bf16 %v1113, %v1113
    %1121 = vmatprep.subr.bf16.mxu0 0
    %1122 = vmatpush1.bf16.msra.mxu0 %v1063
    %1123 = vmatprep.subr.bf16.mxu0 0
    %1124 = vmatpush1.bf16.msra.mxu0 %v1062
    %1125 = vmatprep.subr.bf16.mxu0 0
    %1126 = vmatpush1.bf16.msra.mxu0 %v1061
    %1127 = vmatprep.subr.bf16.mxu0 0
    %1128 = vmatpush1.bf16.msra.mxu0 %v1060
    %1129 = vmatprep.subr.bf16.mxu0 0
    %1130 = vmatpush1.bf16.msra.mxu0 %v1059
    %1131 = vmatprep.subr.bf16.mxu0 0
    %1132 = vmatpush1.bf16.msra.mxu0 %v1058
    %1133 = vmatprep.subr.bf16.mxu0 0
    %1134 = vmatpush1.bf16.msra.mxu0 %v1057
    %1135 = vmatprep.subr.bf16.mxu0 0
    %1136 = vmatpush1.bf16.msra.mxu0 %v1056
    %1137 = vmatprep.subr.bf16.mxu0 0
    %1138 = vmatpush2.bf16.msra.mxu0 0
    %1139 = vmatprep.subr.bf16.mxu0 0
    %1140 = vmatpush2.bf16.msra.mxu0 0
    %1141 = vmatprep.subr.bf16.mxu0 0
    %1142 = vmatpush2.bf16.msra.mxu0 0
    %1143 = vmatprep.subr.bf16.mxu0 0
    %1144 = vmatpush2.bf16.msra.mxu0 0
    %1145 = vmatprep.subr.bf16.mxu0 0
    %1146 = vmatpush2.bf16.msra.mxu0 0
    %1147 = vmatprep.subr.bf16.mxu0 0
    %1148 = vmatpush2.bf16.msra.mxu0 0
    %1149 = vmatprep.subr.bf16.mxu0 0
    %1150 = vmatpush2.bf16.msra.mxu0 0
    %1151 = vmatprep.subr.bf16.mxu0 0
    %1152 = vmatpush2.bf16.msra.mxu0 0
    %1153 = vmatprep.mubr.bf16.mxu0 0
    %1154 = vmatmul.mubr.bf16.gmra.mxu0 %v1120
    %v1155 = vpop.f32.mrf.mxu0
    %v1156 = vadd.f32 0.0, %v1155
    %v1157 = vpop.f32.mrf.mxu0
    %v1158 = vpop.f32.mrf.mxu0
    %v1159 = vpop.f32.mrf.mxu0
    %1160 = vdwg.mxu0
    %v1162 = vrot.slane %v1156, 7
    %v1164 = vadd.f32 %v1001, %v1162
    %v1165 = vtanh.pop %v1164
    %vm1166 = vcmp.eq.s32.totalorder %v1023, 1
    %v1167 = vlaneseq
    %v1168 = vshrl.u32 %v1167, 7
    %v1169 = vsub.s32 1, %v1168
    %v1170 = vrot.slane %v1165, %v1169
    %v1171 = vsel %vm1166, %v1170, %v1119
    %v1172 = vpack.c.bf16 %v1171, %v1171
    %v1173 = vld [vmem:[#allocation10] sm:$0xf]
    %v1174 = vld [vmem:[#allocation10 + $0x4] sm:$0xf]
    %v1175 = vld [vmem:[#allocation10 + $0x8] sm:$0xf]
    %v1176 = vld [vmem:[#allocation10 + $0xc] sm:$0xf]
    %v1177 = vld [vmem:[#allocation10 + $0x10] sm:$0xf]
    %v1178 = vld [vmem:[#allocation10 + $0x14] sm:$0xf]
    %v1179 = vld [vmem:[#allocation10 + $0x18] sm:$0xf]
    %v1180 = vld [vmem:[#allocation10 + $0x1c] sm:$0xf]
    %v1181 = vld [vmem:[#allocation10 + $0x20] sm:$0xf]
    %v1182 = vld [vmem:[#allocation10 + $0x24] sm:$0xf]
    %v1183 = vld [vmem:[#allocation10 + $0x28] sm:$0xf]
    %v1184 = vld [vmem:[#allocation10 + $0x2c] sm:$0xf]
    %v1185 = vld [vmem:[#allocation10 + $0x30] sm:$0xf]
    %v1186 = vld [vmem:[#allocation10 + $0x34] sm:$0xf]
    %v1187 = vld [vmem:[#allocation10 + $0x38] sm:$0xf]
    %v1188 = vld [vmem:[#allocation10 + $0x3c] sm:$0xf]
    %v1189 = vld [vmem:[%s9] sm:$0x1]
    %v1191 = vlaneseq
    %v1192 = vshrl.u32 %v1191, 7
    %v1193 = vsub.s32 0, %v1192
    %v1194 = vrot.slane %v1189, %v1193
    %v1212 = vunpack.c.l.b16 %v1173
    %v1213 = vunpack.c.l.b16 %v1174
    %v1214 = vunpack.c.l.b16 %v1175
    %v1215 = vunpack.c.l.b16 %v1176
    %v1216 = vunpack.c.l.b16 %v1177
    %v1217 = vunpack.c.l.b16 %v1178
    %v1218 = vunpack.c.l.b16 %v1179
    %v1219 = vunpack.c.l.b16 %v1180
    %v1220 = vunpack.c.l.b16 %v1181
    %v1221 = vunpack.c.l.b16 %v1182
    %v1222 = vunpack.c.l.b16 %v1183
    %v1223 = vunpack.c.l.b16 %v1184
    %v1224 = vunpack.c.l.b16 %v1185
    %v1225 = vunpack.c.l.b16 %v1186
    %v1226 = vunpack.c.l.b16 %v1187
    %v1227 = vunpack.c.l.b16 %v1188
    %v1228 = vpack.c.b16 %v1213, %v1212
    %v1229 = vpack.c.b16 %v1215, %v1214
    %v1230 = vpack.c.b16 %v1217, %v1216
    %v1231 = vpack.c.b16 %v1219, %v1218
    %v1232 = vpack.c.b16 %v1221, %v1220
    %v1233 = vpack.c.b16 %v1223, %v1222
    %v1234 = vpack.c.b16 %v1225, %v1224
    %v1235 = vpack.c.b16 %v1227, %v1226
    %1244 = vmatprep.subr.bf16.mxu0 0
    %1245 = vmatpush1.bf16.msra.mxu0 %v1235
    %1246 = vmatprep.subr.bf16.mxu0 0
    %1247 = vmatpush1.bf16.msra.mxu0 %v1234
    %1248 = vmatprep.subr.bf16.mxu0 0
    %1249 = vmatpush1.bf16.msra.mxu0 %v1233
    %1250 = vmatprep.subr.bf16.mxu0 0
    %1251 = vmatpush1.bf16.msra.mxu0 %v1232
    %1252 = vmatprep.subr.bf16.mxu0 0
    %1253 = vmatpush1.bf16.msra.mxu0 %v1231
    %1254 = vmatprep.subr.bf16.mxu0 0
    %1255 = vmatpush1.bf16.msra.mxu0 %v1230
    %1256 = vmatprep.subr.bf16.mxu0 0
    %1257 = vmatpush1.bf16.msra.mxu0 %v1229
    %1258 = vmatprep.subr.bf16.mxu0 0
    %1259 = vmatpush1.bf16.msra.mxu0 %v1228
    %1260 = vmatprep.subr.bf16.mxu0 0
    %1261 = vmatpush2.bf16.msra.mxu0 0
    %1262 = vmatprep.subr.bf16.mxu0 0
    %1263 = vmatpush2.bf16.msra.mxu0 0
    %1264 = vmatprep.subr.bf16.mxu0 0
    %1265 = vmatpush2.bf16.msra.mxu0 0
    %1266 = vmatprep.subr.bf16.mxu0 0
    %1267 = vmatpush2.bf16.msra.mxu0 0
    %1268 = vmatprep.subr.bf16.mxu0 0
    %1269 = vmatpush2.bf16.msra.mxu0 0
    %1270 = vmatprep.subr.bf16.mxu0 0
    %1271 = vmatpush2.bf16.msra.mxu0 0
    %1272 = vmatprep.subr.bf16.mxu0 0
    %1273 = vmatpush2.bf16.msra.mxu0 0
    %1274 = vmatprep.subr.bf16.mxu0 0
    %1275 = vmatpush2.bf16.msra.mxu0 0
    %1276 = vmatprep.mubr.bf16.mxu0 0
    %1277 = vmatmul.mubr.bf16.gmra.mxu0 %v1172
    %v1278 = vpop.f32.mrf.mxu0
    %v1279 = vadd.f32 %v1194, %v1278
    %v1280 = vpop.f32.mrf.mxu0
    %v1281 = vpop.f32.mrf.mxu0
    %v1282 = vpop.f32.mrf.mxu0
    %1283 = vdwg.mxu0
    %1284 = vmax.xlane.f32.xlu0 %v1279
    %v1285 = vpop.xlane.xlu0 %1284
    %v1286 = vsub.f32 %v1279, %v1285
    %v1287 = vmul.f32 %v1286, 1.442695
    %v1288 = vpow.pop %v1287
    %1289 = vadd.xlane.f32.xlu0 %v1288
    %v1290 = vpop.xlane.xlu0 %1289
    %v1291 = vrcp.pop %v1290
    %v1292 = vmul.f32 %v1288, %v1291
    %1293 = vst [vmem:[#allocation13] sm:$0xff] %v1292
    %v1294 = vpack.c.bf16 %v1292, %v1292
    %v1295 = vld [vmem:[#allocation11] sm:$0xf]
    %v1296 = vld [vmem:[#allocation11 + $0x4] sm:$0xf]
    %v1297 = vld [vmem:[#allocation11 + $0x8] sm:$0xf]
    %v1298 = vld [vmem:[#allocation11 + $0xc] sm:$0xf]
    %v1299 = vld [vmem:[#allocation11 + $0x10] sm:$0xf]
    %v1300 = vld [vmem:[#allocation11 + $0x14] sm:$0xf]
    %v1301 = vld [vmem:[#allocation11 + $0x18] sm:$0xf]
    %v1302 = vld [vmem:[#allocation11 + $0x1c] sm:$0xf]
    %v1303 = vld [vmem:[#allocation11 + $0x20] sm:$0xf]
    %v1304 = vld [vmem:[#allocation11 + $0x24] sm:$0xf]
    %v1305 = vld [vmem:[#allocation11 + $0x28] sm:$0xf]
    %v1306 = vld [vmem:[#allocation11 + $0x2c] sm:$0xf]
    %v1307 = vld [vmem:[#allocation11 + $0x30] sm:$0xf]
    %v1308 = vld [vmem:[#allocation11 + $0x34] sm:$0xf]
    %v1309 = vld [vmem:[#allocation11 + $0x38] sm:$0xf]
    %v1310 = vld [vmem:[#allocation11 + $0x3c] sm:$0xf]
    %v1311 = vld [vmem:[%s11] sm:$0x1]
    %v1313 = vlaneseq
    %v1314 = vshrl.u32 %v1313, 7
    %v1315 = vsub.s32 0, %v1314
    %v1316 = vrot.slane %v1311, %v1315
    %v1334 = vunpack.c.l.b16 %v1295
    %v1335 = vunpack.c.l.b16 %v1296
    %v1336 = vunpack.c.l.b16 %v1297
    %v1337 = vunpack.c.l.b16 %v1298
    %v1338 = vunpack.c.l.b16 %v1299
    %v1339 = vunpack.c.l.b16 %v1300
    %v1340 = vunpack.c.l.b16 %v1301
    %v1341 = vunpack.c.l.b16 %v1302
    %v1342 = vunpack.c.l.b16 %v1303
    %v1343 = vunpack.c.l.b16 %v1304
    %v1344 = vunpack.c.l.b16 %v1305
    %v1345 = vunpack.c.l.b16 %v1306
    %v1346 = vunpack.c.l.b16 %v1307
    %v1347 = vunpack.c.l.b16 %v1308
    %v1348 = vunpack.c.l.b16 %v1309
    %v1349 = vunpack.c.l.b16 %v1310
    %v1350 = vpack.c.b16 %v1335, %v1334
    %v1351 = vpack.c.b16 %v1337, %v1336
    %v1352 = vpack.c.b16 %v1339, %v1338
    %v1353 = vpack.c.b16 %v1341, %v1340
    %v1354 = vpack.c.b16 %v1343, %v1342
    %v1355 = vpack.c.b16 %v1345, %v1344
    %v1356 = vpack.c.b16 %v1347, %v1346
    %v1357 = vpack.c.b16 %v1349, %v1348
    %1366 = vmatprep.subr.bf16.mxu0 0
    %1367 = vmatpush1.bf16.msra.mxu0 %v1357
    %1368 = vmatprep.subr.bf16.mxu0 0
    %1369 = vmatpush1.bf16.msra.mxu0 %v1356
    %1370 = vmatprep.subr.bf16.mxu0 0
    %1371 = vmatpush1.bf16.msra.mxu0 %v1355
    %1372 = vmatprep.subr.bf16.mxu0 0
    %1373 = vmatpush1.bf16.msra.mxu0 %v1354
    %1374 = vmatprep.subr.bf16.mxu0 0
    %1375 = vmatpush1.bf16.msra.mxu0 %v1353
    %1376 = vmatprep.subr.bf16.mxu0 0
    %1377 = vmatpush1.bf16.msra.mxu0 %v1352
    %1378 = vmatprep.subr.bf16.mxu0 0
    %1379 = vmatpush1.bf16.msra.mxu0 %v1351
    %1380 = vmatprep.subr.bf16.mxu0 0
    %1381 = vmatpush1.bf16.msra.mxu0 %v1350
    %1382 = vmatprep.subr.bf16.mxu0 0
    %1383 = vmatpush2.bf16.msra.mxu0 0
    %1384 = vmatprep.subr.bf16.mxu0 0
    %1385 = vmatpush2.bf16.msra.mxu0 0
    %1386 = vmatprep.subr.bf16.mxu0 0
    %1387 = vmatpush2.bf16.msra.mxu0 0
    %1388 = vmatprep.subr.bf16.mxu0 0
    %1389 = vmatpush2.bf16.msra.mxu0 0
    %1390 = vmatprep.subr.bf16.mxu0 0
    %1391 = vmatpush2.bf16.msra.mxu0 0
    %1392 = vmatprep.subr.bf16.mxu0 0
    %1393 = vmatpush2.bf16.msra.mxu0 0
    %1394 = vmatprep.subr.bf16.mxu0 0
    %1395 = vmatpush2.bf16.msra.mxu0 0
    %1396 = vmatprep.subr.bf16.mxu0 0
    %1397 = vmatpush2.bf16.msra.mxu0 0
    %1398 = vmatprep.mubr.bf16.mxu0 0
    %1399 = vmatmul.mubr.bf16.gmra.mxu0 %v1294
    %v1400 = vpop.f32.mrf.mxu0
    %v1401 = vadd.f32 %v1316, %v1400
    %v1402 = vpop.f32.mrf.mxu0
    %v1403 = vpop.f32.mrf.mxu0
    %v1404 = vpop.f32.mrf.mxu0
    %1405 = vdwg.mxu0
    %1406 = vst [vmem:[#allocation14] sm:$0xff] %v1401
    // Predicated region
    $region74: #{tpu_custom_call.1} parent=1 // pred_check
      _
    $region75: #{tpu_custom_call.1} parent=1 // pred_check_branch
      %1408 = sbr.rel (0) target = $region77
    $region76: #{tpu_custom_call.1} parent=1 // pred_region
      %s1410 = ssub.s32 128, 128
      %1411 = vsyncadd [#allocation4], %s1410
      %s1413 = sshll.u32 [#allocation13], 4
      %s1414 = int_to_ptr.vmem [resolvable:$true] %s1413
      %1416 = dma.vmem_to_hbm [thread:$0]  %s1414, 128, %s12, [#allocation4]
    $region77: #{tpu_custom_call.1} parent=1 // pred_fallthru
      _
    // Predicated region
    $region78: #{tpu_custom_call.1} parent=1 // pred_check
      _
    $region79: #{tpu_custom_call.1} parent=1 // pred_check_branch
      %1418 = sbr.rel (0) target = $region81
    $region80: #{tpu_custom_call.1} parent=1 // pred_region
      %s1420 = ssub.s32 128, 128
      %1421 = vsyncadd [#allocation15], %s1420
      %s1423 = sshll.u32 [#allocation14], 4
      %s1424 = int_to_ptr.vmem [resolvable:$true] %s1423
      %1426 = dma.vmem_to_hbm [thread:$0]  %s1424, 128, %s13, [#allocation15]
    $region81: #{tpu_custom_call.1} parent=1 // pred_fallthru
      _
    // Predicated region
    $region82: #{tpu_custom_call.1} parent=1 // pred_check
      _
    $region83: #{tpu_custom_call.1} parent=1 // pred_check_branch
      %1428 = sbr.rel (0) target = $region85
    $region84: #{tpu_custom_call.1} parent=1 // pred_region
      %1429 = dma.done [#allocation4], 128
    $region85: #{tpu_custom_call.1} parent=1 // pred_fallthru
      _
    // Predicated region
    $region86: #{tpu_custom_call.1} parent=1 // pred_check
      _
    $region87: #{tpu_custom_call.1} parent=1 // pred_check_branch
      %1431 = sbr.rel (0) target = $region89
    $region88: #{tpu_custom_call.1} parent=1 // pred_region
      %1432 = dma.done [#allocation15], 128
    $region89: #{tpu_custom_call.1} parent=1 // pred_fallthru
      _
    %1433 = vsyncpa [#allocation3], 1
    %1434 = vsyncpa [#allocation6], 1
    %1435 = vsyncpa [#allocation9], 1
    %1436 = vsyncpa [#allocation12], 1
    %1437 = vsyncpa [#allocation4], 1
    %1438 = vsyncpa [#allocation15], 1

</llo_original>
